<compile_context>
chip_gen: v6e
topology: v6e:2x2x1
jax: 0.10.0
libtpu: 0.0.40
codegen_flags: <defaults>
</compile_context>

<pallas_src>
import functools

import jax
import jax.numpy as jnp
from jax import lax
from jax.experimental import pallas as pl
from jax.experimental.pallas import tpu as pltpu


_NEG_PAD = -1e9  # bias for padded vocab columns -> softmax-neutral (exp -> 0)
                 # (assumes real logits stay far above -1e9; true with f32 acc)


def _round_up(x, m):
    return (x + m - 1) // m * m


def _pick_tile(n, candidates):
    for c in candidates:
        if n % c == 0:
            return c
    return n


def _vmem_limit(est_bytes):
    # 2x headroom over the static estimate, floor 32 MiB, cap 64 MiB (v7x physical).
    return int(min(max(2 * est_bytes, 32 * 1024 * 1024), 64 * 1024 * 1024))


# ----------------------------------------------------------------------------
# Kernel 1: fused input-projection + recurrence.
#   chunk:  xp = x_chunk @ W_ih + (b_ih + b_hh)        (one MXU matmul -> VMEM)
#   steps:  h_t = tanh(xp_t + h_{t-1} @ W_hh)          (h carried in vregs)
# Grid: (batch blocks [parallel], time chunks [arbitrary]).
# ----------------------------------------------------------------------------
def _rnn_fused_kernel(x_ref, wih_ref, b_ref, whh_ref, h0_ref,
                      y_ref, hT_ref, xp_sc, h_sc, *, tc, unroll):
    c = pl.program_id(1)                      # time-chunk index
    tb, nhid = h0_ref.shape
    in_dim = x_ref.shape[2]

    # (1) Hoisted per-chunk input projection (good MXU shape: M = tc*tb).
    x2d = x_ref[...].reshape(tc * tb, in_dim).astype(wih_ref.dtype)
    xp = (jnp.dot(x2d, wih_ref[...], preferred_element_type=jnp.float32)
          + b_ref[...])                       # bias kept f32
    xp_sc[...] = xp.reshape(tc, tb, nhid)

    # (2) Serial recurrence: h lives in the fori carry (vregs); VMEM h_sc only
    #     touched at chunk boundaries.
    @pl.when(c == 0)
    def _():
        h_sc[...] = h0_ref[...]

    h_in = h_sc[...]

    def step(t, h):
        pre = xp_sc[t] + jnp.dot(h.astype(whh_ref.dtype), whh_ref[...],
                                 preferred_element_type=jnp.float32)
        h_new = jnp.tanh(pre)                 # f32 VPU/EUP elementwise
        y_ref[t] = h_new.astype(y_ref.dtype)
        return h_new

    # TODO(synk): weight-stationary W_hh via pltpu.matmul_push_rhs/acc_lhs/pop
    # could avoid re-pushing the RHS every step; kept on jnp.dot for portability.
    h_out = lax.fori_loop(0, tc, step, h_in, unroll=unroll)
    h_sc[...] = h_out

    @pl.when(c == pl.num_programs(1) - 1)
    def _():
        hT_ref[...] = h_out                   # f32 final hidden state


def rnn_recurrence_fused(x, h0, w_ih, bias, w_hh, out_dtype):
    """x: (seq, batch_p, in_dim_p); h0: (batch_p, nhid_p) f32;
    w_ih: (in_dim_p, nhid_p); bias: (1, nhid_p) f32; w_hh: (nhid_p, nhid_p)."""
    seq, batch_p, in_dim_p = x.shape
    nhid_p = w_hh.shape[0]

    # Batch-parallel split (megacore on v7x / multi-core sharding) when possible.
    tb = batch_p // 2 if (batch_p >= 16 and (batch_p // 2) % 8 == 0) else batch_p
    tc = _pick_tile(seq, [64, 32, 16, 8, 4, 2, 1])
    unroll = min(tc, 8)                       # cap unroll to avoid code bloat

    est = 4 * (2 * tc * tb * in_dim_p        # x (double-buffered)
               + in_dim_p * nhid_p           # W_ih
               + nhid_p * nhid_p             # W_hh
               + nhid_p + tb * nhid_p        # bias + h0
               + 2 * tc * tb * nhid_p        # y (double-buffered)
               + tb * nhid_p                 # hT
               + tc * tb * nhid_p            # xp scratch
               + tb * nhid_p)                # h scratch

    kernel = functools.partial(_rnn_fused_kernel, tc=tc, unroll=unroll)
    y, hT = pl.pallas_call(
        kernel,
        out_shape=(jax.ShapeDtypeStruct((seq, batch_p, nhid_p), out_dtype),
                   jax.ShapeDtypeStruct((batch_p, nhid_p), jnp.float32)),
        grid_spec=pltpu.PrefetchScalarGridSpec(
            num_scalar_prefetch=0,
            grid=(batch_p // tb, seq // tc),
            in_specs=[
                pl.BlockSpec((tc, tb, in_dim_p), lambda b, c: (c, b, 0)),
                pl.BlockSpec((in_dim_p, nhid_p), lambda b, c: (0, 0)),
                pl.BlockSpec((1, nhid_p), lambda b, c: (0, 0)),
                pl.BlockSpec((nhid_p, nhid_p), lambda b, c: (0, 0)),
                pl.BlockSpec((tb, nhid_p), lambda b, c: (b, 0)),
            ],
            out_specs=[
                pl.BlockSpec((tc, tb, nhid_p), lambda b, c: (c, b, 0)),
                pl.BlockSpec((tb, nhid_p), lambda b, c: (b, 0)),
            ],
            scratch_shapes=[pltpu.VMEM((tc, tb, nhid_p), jnp.float32),  # xp chunk
                            pltpu.VMEM((tb, nhid_p), jnp.float32)],     # h carry
        ),
        compiler_params=pltpu.CompilerParams(
            dimension_semantics=("parallel", "arbitrary"),
            vmem_limit_bytes=_vmem_limit(est)),
    )(x, w_ih, bias, w_hh, h0)
    return y, hT


# ----------------------------------------------------------------------------
# Kernel 2: decoder Linear + LogSoftmax, tiled over rows and vocab.
# Pass 0 computes logits once per vocab tile (cached in VMEM) and accumulates
# the running max / sum per row; pass 1 reads the cache and writes normalized
# log-probs.  W/b index maps freeze during pass 1 (no re-streaming); the output
# index map (i, k*p) never retires an unwritten block during pass 0.
# ----------------------------------------------------------------------------
def _decoder_kernel(h_ref, w_ref, b_ref, out_ref, m_sc, l_sc, logit_sc):
    p = pl.program_id(1)   # pass: 0 = stats (+ cache logits), 1 = write
    k = pl.program_id(2)   # vocab tile

    @pl.when((p == 0) & (k == 0))
    def _():
        m_sc[...] = jnp.full_like(m_sc, -jnp.inf)
        l_sc[...] = jnp.zeros_like(l_sc)

    @pl.when(p == 0)
    def _():
        logits = (jnp.dot(h_ref[...].astype(w_ref.dtype), w_ref[...],
                          preferred_element_type=jnp.float32) + b_ref[...])
        logit_sc[k] = logits                      # cache: no pass-1 recompute
        m_prev = m_sc[...]
        m_new = jnp.maximum(m_prev, jnp.max(logits, axis=-1, keepdims=True))
        l_sc[...] = (l_sc[...] * jnp.exp(m_prev - m_new)
                     + jnp.sum(jnp.exp(logits - m_new), axis=-1, keepdims=True))
        m_sc[...] = m_new

    @pl.when(p == 1)
    def _():
        out_ref[...] = (logit_sc[k] - m_sc[...]
                        - jnp.log(l_sc[...])).astype(out_ref.dtype)


def decoder_logsoftmax(h2d, w_t, b):
    """h2d: (rows, nhid_p), w_t: (nhid_p, ntok_p), b: (1, ntok_p) f32."""
    rows, nhid_p = h2d.shape
    ntok_p = w_t.shape[1]
    tr = _pick_tile(rows, [256, 128, 64, 32, 16, 8])
    tn = _pick_tile(ntok_p, [512, 256, 128])
    nk = ntok_p // tn

    est = 4 * (2 * tr * nhid_p               # h (double-buffered)
               + 2 * nhid_p * tn + 2 * tn    # W / b tiles (double-buffered)
               + 2 * tr * tn                 # out tile (double-buffered)
               + nk * tr * tn                # logit cache (f32)
               + 4 * tr)                     # stats
    # TODO(synk): at very large vocab on v7x (64 MiB VMEM) use a bf16 logit cache
    # or a smaller tr; here the f32 cache keeps full reference accuracy.

    return pl.pallas_call(
        _decoder_kernel,
        out_shape=jax.ShapeDtypeStruct((rows, ntok_p), jnp.float32),
        grid_spec=pltpu.PrefetchScalarGridSpec(
            num_scalar_prefetch=0,
            grid=(rows // tr, 2, nk),
            in_specs=[
                pl.BlockSpec((tr, nhid_p), lambda i, p, k: (i, 0)),
                pl.BlockSpec((nhid_p, tn), lambda i, p, k: (0, k * (1 - p))),
                pl.BlockSpec((1, tn), lambda i, p, k: (0, k * (1 - p))),
            ],
            out_specs=pl.BlockSpec((tr, tn), lambda i, p, k: (i, k * p)),
            scratch_shapes=[pltpu.VMEM((tr, 1), jnp.float32),
                            pltpu.VMEM((tr, 1), jnp.float32),
                            pltpu.VMEM((nk, tr, tn), jnp.float32)],
        ),
        compiler_params=pltpu.CompilerParams(
            dimension_semantics=("parallel", "arbitrary", "arbitrary"),
            vmem_limit_bytes=_vmem_limit(est)),
    )(h2d, w_t, b)


# ----------------------------------------------------------------------------
# Model: parameter init (deterministic) + forward.
# ----------------------------------------------------------------------------
def init_params(key, ntoken, ninp, nhid, nlayers):
    keys = jax.random.split(key, 2 + 4 * nlayers)
    initrange = 0.1
    params = {
        "encoder": jax.random.uniform(keys[0], (ntoken, ninp), jnp.float32,
                                      -initrange, initrange),
        "dec_w_t": jax.random.uniform(keys[1], (nhid, ntoken), jnp.float32,
                                      -initrange, initrange),   # decoder.weight^T
        "dec_b": jnp.zeros((1, ntoken), jnp.float32),
    }
    stdv = 1.0 / jnp.sqrt(jnp.float32(nhid))   # PyTorch nn.RNN default init
    for l in range(nlayers):
        in_dim = ninp if l == 0 else nhid
        k = keys[2 + 4 * l: 2 + 4 * (l + 1)]
        params[f"w_ih_t_{l}"] = jax.random.uniform(k[0], (in_dim, nhid),
                                                   jnp.float32, -stdv, stdv)
        params[f"w_hh_t_{l}"] = jax.random.uniform(k[1], (nhid, nhid),
                                                   jnp.float32, -stdv, stdv)
        params[f"b_ih_{l}"] = jax.random.uniform(k[2], (1, nhid),
                                                 jnp.float32, -stdv, stdv)
        params[f"b_hh_{l}"] = jax.random.uniform(k[3], (1, nhid),
                                                 jnp.float32, -stdv, stdv)
    return params


@functools.partial(jax.jit, static_argnames=("nlayers", "dot_dtype"))
def srn_forward(params, tokens, hidden, nlayers, dot_dtype=jnp.float32):
    """tokens: (seq, batch) int32, hidden: (nlayers, batch, nhid).

    Returns (log_probs (seq, batch, ntoken), new_hidden (nlayers, batch, nhid)).
    dot_dtype: matmul-operand / activation dtype.  bf16 is valid on v5e, v6e and
    v7x (MXU is bf16-native on all three); accumulation and all elementwise math
    (tanh/exp/log, biases, hidden-state output) stay f32.  Note: in bf16 mode the
    recurrence LHS (h) is cast to bf16 each step; validate at target seq length.
    """
    seq, batch = tokens.shape
    ntoken, ninp = params["encoder"].shape
    nhid = params["w_hh_t_0"].shape[0]

    # Lane/sublane-dense padded sizes (zero padding is numerically neutral here).
    batch_p = _round_up(batch, 8)
    ninp_p = _round_up(ninp, 128)
    nhid_p = _round_up(nhid, 128)
    ntok_p = _round_up(ntoken, 128)

    act_dtype = dot_dtype  # bf16 activations when bf16 operands -> halves HBM bytes

    # Embedding gather is glue (plain JAX); dropout = identity in eval mode.
    # TODO(synk): training-mode nn.Dropout (RNG masking) intentionally omitted.
    x = params["encoder"].astype(act_dtype)[tokens]            # (seq, batch, ninp)
    x = jnp.pad(x, ((0, 0), (0, batch_p - batch), (0, ninp_p - ninp)))
    hidden_p = jnp.pad(hidden,
                       ((0, 0), (0, batch_p - batch), (0, nhid_p - nhid)))

    new_hidden = []
    for l in range(nlayers):
        in_dim = ninp if l == 0 else nhid
        in_dim_p = ninp_p if l == 0 else nhid_p
        w_ih = jnp.pad(params[f"w_ih_t_{l}"],
                       ((0, in_dim_p - in_dim), (0, nhid_p - nhid))).astype(dot_dtype)
        w_hh = jnp.pad(params[f"w_hh_t_{l}"],
                       ((0, nhid_p - nhid), (0, nhid_p - nhid))).astype(dot_dtype)
        bias = jnp.pad(params[f"b_ih_{l}"] + params[f"b_hh_{l}"],
                       ((0, 0), (0, nhid_p - nhid)))           # pre-summed, f32

        # Fused input-projection + recurrence (no xp HBM round-trip).
        y, hT = rnn_recurrence_fused(x, hidden_p[l], w_ih, bias, w_hh,
                                     out_dtype=act_dtype)
        new_hidden.append(hT[:batch, :nhid])
        x = y                                                  # dropout = identity

    # Decoder + log-softmax, tiled (rows parallel, vocab streamed once).
    dec_w = jnp.pad(params["dec_w_t"],
                    ((0, nhid_p - nhid), (0, ntok_p - ntoken))).astype(dot_dtype)
    dec_b = jnp.pad(params["dec_b"], ((0, 0), (0, ntok_p - ntoken)),
                    constant_values=_NEG_PAD)
    h2d = x.reshape(seq * batch_p, nhid_p)
    decoded = decoder_logsoftmax(h2d, dec_w, dec_b)
    decoded = decoded.reshape(seq, batch_p, ntok_p)[:, :batch, :ntoken]
    return decoded, jnp.stack(new_hidden)


# ----------------------------------------------------------------------------
# Pure-JAX reference (same math) for a correctness check.
# ----------------------------------------------------------------------------
def srn_forward_ref(params, tokens, hidden, nlayers):
    x = params["encoder"][tokens]
    new_hidden = []
    for l in range(nlayers):
        w_ih, w_hh = params[f"w_ih_t_{l}"], params[f"w_hh_t_{l}"]
        b_ih, b_hh = params[f"b_ih_{l}"], params[f"b_hh_{l}"]

        def step(h, xt):
            h_new = jnp.tanh(xt @ w_ih + h @ w_hh + b_ih + b_hh)
            return h_new, h_new

        hT, ys = jax.lax.scan(step, hidden[l], x)
        new_hidden.append(hT)
        x = ys
    seq, batch, nhid = x.shape
    logits = x.reshape(seq * batch, nhid) @ params["dec_w_t"] + params["dec_b"]
    logp = jax.nn.log_softmax(logits, axis=-1)
    return logp.reshape(seq, batch, -1), jnp.stack(new_hidden)


if __name__ == "__main__":
    ntoken, ninp, nhid, nlayers = 256, 32, 32, 2
    seq, batch = 8, 2

    key = jax.random.PRNGKey(0)
    pkey, tkey = jax.random.split(key)
    params = init_params(pkey, ntoken, ninp, nhid, nlayers)
    tokens = jax.random.randint(tkey, (seq, batch), 0, ntoken, dtype=jnp.int32)
    hidden0 = jnp.zeros((nlayers, batch, nhid), jnp.float32)   # init_hidden

    # f32 path (reference-accurate).
    logp, hidden1 = srn_forward(params, tokens, hidden0, nlayers)
    logp = jax.block_until_ready(logp)
    hidden1 = jax.block_until_ready(hidden1)

    ref_logp, ref_hidden = srn_forward_ref(params, tokens, hidden0, nlayers)
    assert logp.shape == (seq, batch, ntoken)
    assert hidden1.shape == (nlayers, batch, nhid)
    assert jnp.allclose(logp, ref_logp, atol=1e-4, rtol=1e-4)
    assert jnp.allclose(hidden1, ref_hidden, atol=1e-4, rtol=1e-4)

    # bf16-MXU path (valid on v5e/v6e/v7x): bf16 operands + activations,
    # f32 accumulation/elementwise; checked against the f32 reference.
    logp_bf16, hidden1_bf16 = srn_forward(params, tokens, hidden0, nlayers,
                                          dot_dtype=jnp.bfloat16)
    logp_bf16 = jax.block_until_ready(logp_bf16)
    hidden1_bf16 = jax.block_until_ready(hidden1_bf16)
    assert jnp.allclose(logp_bf16, ref_logp, atol=5e-2, rtol=5e-2)
    assert jnp.allclose(hidden1_bf16, ref_hidden, atol=5e-2, rtol=5e-2)

    print("KERNEL_OK")
</pallas_src>

<mosaic_0001>
module attributes {stable_mosaic.version = 11 : i64} {
  func.func @_decoder_kernel(%arg0: i32, %arg1: i32, %arg2: i32, %arg3: memref<64x128xf32, #tpu.memory_space<vmem>>, %arg4: memref<128x256xf32, #tpu.memory_space<vmem>>, %arg5: memref<1x256xf32, #tpu.memory_space<vmem>>, %arg6: memref<64x256xf32, #tpu.memory_space<vmem>>, %arg7: memref<64x1xf32, #tpu.memory_space<vmem>>, %arg8: memref<64x1xf32, #tpu.memory_space<vmem>>, %arg9: memref<1x64x256xf32, #tpu.memory_space<vmem>>) attributes {dimension_semantics = [#tpu.dimension_semantics<parallel>, #tpu.dimension_semantics<arbitrary>, #tpu.dimension_semantics<arbitrary>], iteration_bounds = array<i64: 1, 2, 1>, scalar_prefetch = 0 : i64, scratch_operands = 3 : i64, tpu.core_type = #tpu.core_type<tc>, window_params = [{transform_indices = @transform_0, window_bounds = array<i64: 64, 128>}, {transform_indices = @transform_1, window_bounds = array<i64: 128, 256>}, {transform_indices = @transform_2, window_bounds = array<i64: 1, 256>}, {transform_indices = @transform_3, window_bounds = array<i64: 64, 256>}]} {
    %c0_i32 = arith.constant 0 : i32
    %0 = arith.cmpi eq, %arg1, %c0_i32 : i32
    %c0_i32_0 = arith.constant 0 : i32
    %1 = arith.cmpi eq, %arg2, %c0_i32_0 : i32
    %2 = arith.andi %0, %1 : i1
    %3 = arith.extui %2 : i1 to i32
    %c0_i32_1 = arith.constant 0 : i32
    %4 = arith.cmpi ne, %3, %c0_i32_1 : i32
    scf.if %4 {
      %cst = arith.constant 0xFF800000 : f32
      %11 = vector.broadcast %cst : f32 to vector<64x1xf32>
      %c0 = arith.constant 0 : index
      %c0_5 = arith.constant 0 : index
      %12 = vector.load %arg7[%c0, %c0_5] : memref<64x1xf32, #tpu.memory_space<vmem>>, vector<64x1xf32>
      tpu.vector_store %arg7[%c0, %c0_5], %11 {strides = array<i32>} : memref<64x1xf32, #tpu.memory_space<vmem>>, vector<64x1xf32>,
      %cst_6 = arith.constant 0.000000e+00 : f32
      %13 = vector.broadcast %cst_6 : f32 to vector<64x1xf32>
      %c0_7 = arith.constant 0 : index
      %c0_8 = arith.constant 0 : index
      %14 = vector.load %arg8[%c0_7, %c0_8] : memref<64x1xf32, #tpu.memory_space<vmem>>, vector<64x1xf32>
      tpu.vector_store %arg8[%c0_7, %c0_8], %13 {strides = array<i32>} : memref<64x1xf32, #tpu.memory_space<vmem>>, vector<64x1xf32>,
    } else {
    }
    %c0_i32_2 = arith.constant 0 : i32
    %5 = arith.cmpi eq, %arg1, %c0_i32_2 : i32
    %6 = arith.extui %5 : i1 to i32
    %c0_i32_3 = arith.constant 0 : i32
    %7 = arith.cmpi ne, %6, %c0_i32_3 : i32
    scf.if %7 {
      %c0 = arith.constant 0 : index
      %c0_5 = arith.constant 0 : index
      %11 = vector.load %arg3[%c0, %c0_5] : memref<64x128xf32, #tpu.memory_space<vmem>>, vector<64x128xf32>
      %c0_6 = arith.constant 0 : index
      %c0_7 = arith.constant 0 : index
      %12 = vector.load %arg4[%c0_6, %c0_7] : memref<128x256xf32, #tpu.memory_space<vmem>>, vector<128x256xf32>
      %cst = arith.constant dense<0.000000e+00> : vector<64x256xf32>
      %13 = tpu.matmul %11, %12, %cst {dimension_numbers = #tpu.dot_dimension_numbers<[1], [0], [0], [1], [0, 0, 1, 1], [], []>} : vector<64x128xf32>, vector<128x256xf32>, vector<64x256xf32> -> vector<64x256xf32>
      %c0_8 = arith.constant 0 : index
      %c0_9 = arith.constant 0 : index
      %14 = vector.load %arg5[%c0_8, %c0_9] : memref<1x256xf32, #tpu.memory_space<vmem>>, vector<1x256xf32>
      %15 = vector.broadcast %14 : vector<1x256xf32> to vector<64x256xf32>
      %16 = arith.addf %13, %15 : vector<64x256xf32>
      %17 = arith.index_cast %arg2 : i32 to index
      %c0_10 = arith.constant 0 : index
      %c0_11 = arith.constant 0 : index
      %18 = vector.load %arg9[%17, %c0_10, %c0_11] : memref<1x64x256xf32, #tpu.memory_space<vmem>>, vector<1x64x256xf32>
      %19 = vector.shape_cast %18 : vector<1x64x256xf32> to vector<64x256xf32>
      %20 = vector.shape_cast %16 : vector<64x256xf32> to vector<1x64x256xf32>
      tpu.vector_store %arg9[%17, %c0_10, %c0_11], %20 {strides = array<i32>} : memref<1x64x256xf32, #tpu.memory_space<vmem>>, vector<1x64x256xf32>,
      %c0_12 = arith.constant 0 : index
      %c0_13 = arith.constant 0 : index
      %21 = vector.load %arg7[%c0_12, %c0_13] : memref<64x1xf32, #tpu.memory_space<vmem>>, vector<64x1xf32>
      %cst_14 = arith.constant dense<0xFF800000> : vector<64xf32>
      %22 = vector.multi_reduction <maximumf>, %16, %cst_14 [1] : vector<64x256xf32> to vector<64xf32>
      %23 = vector.shape_cast %22 : vector<64xf32> to vector<64x1xf32>
      %24 = arith.maximumf %21, %23 : vector<64x1xf32>
      %c0_15 = arith.constant 0 : index
      %c0_16 = arith.constant 0 : index
      %25 = vector.load %arg8[%c0_15, %c0_16] : memref<64x1xf32, #tpu.memory_space<vmem>>, vector<64x1xf32>
      %26 = arith.subf %21, %24 : vector<64x1xf32>
      %27 = math.exp %26 : vector<64x1xf32>
      %28 = arith.mulf %25, %27 : vector<64x1xf32>
      %29 = vector.broadcast %24 : vector<64x1xf32> to vector<64x256xf32>
      %30 = arith.subf %16, %29 : vector<64x256xf32>
      %31 = math.exp %30 : vector<64x256xf32>
      %cst_17 = arith.constant dense<0.000000e+00> : vector<64xf32>
      %32 = vector.multi_reduction <add>, %31, %cst_17 [1] : vector<64x256xf32> to vector<64xf32>
      %33 = vector.shape_cast %32 : vector<64xf32> to vector<64x1xf32>
      %34 = arith.addf %28, %33 : vector<64x1xf32>
      %c0_18 = arith.constant 0 : index
      %c0_19 = arith.constant 0 : index
      %35 = vector.load %arg8[%c0_18, %c0_19] : memref<64x1xf32, #tpu.memory_space<vmem>>, vector<64x1xf32>
      tpu.vector_store %arg8[%c0_18, %c0_19], %34 {strides = array<i32>} : memref<64x1xf32, #tpu.memory_space<vmem>>, vector<64x1xf32>,
      %c0_20 = arith.constant 0 : index
      %c0_21 = arith.constant 0 : index
      %36 = vector.load %arg7[%c0_20, %c0_21] : memref<64x1xf32, #tpu.memory_space<vmem>>, vector<64x1xf32>
      tpu.vector_store %arg7[%c0_20, %c0_21], %24 {strides = array<i32>} : memref<64x1xf32, #tpu.memory_space<vmem>>, vector<64x1xf32>,
    } else {
    }
    %c1_i32 = arith.constant 1 : i32
    %8 = arith.cmpi eq, %arg1, %c1_i32 : i32
    %9 = arith.extui %8 : i1 to i32
    %c0_i32_4 = arith.constant 0 : i32
    %10 = arith.cmpi ne, %9, %c0_i32_4 : i32
    scf.if %10 {
      %11 = arith.index_cast %arg2 : i32 to index
      %c0 = arith.constant 0 : index
      %c0_5 = arith.constant 0 : index
      %12 = vector.load %arg9[%11, %c0, %c0_5] : memref<1x64x256xf32, #tpu.memory_space<vmem>>, vector<1x64x256xf32>
      %13 = vector.shape_cast %12 : vector<1x64x256xf32> to vector<64x256xf32>
      %c0_6 = arith.constant 0 : index
      %c0_7 = arith.constant 0 : index
      %14 = vector.load %arg7[%c0_6, %c0_7] : memref<64x1xf32, #tpu.memory_space<vmem>>, vector<64x1xf32>
      %15 = vector.broadcast %14 : vector<64x1xf32> to vector<64x256xf32>
      %16 = arith.subf %13, %15 : vector<64x256xf32>
      %c0_8 = arith.constant 0 : index
      %c0_9 = arith.constant 0 : index
      %17 = vector.load %arg8[%c0_8, %c0_9] : memref<64x1xf32, #tpu.memory_space<vmem>>, vector<64x1xf32>
      %18 = math.log %17 : vector<64x1xf32>
      %19 = vector.broadcast %18 : vector<64x1xf32> to vector<64x256xf32>
      %20 = arith.subf %16, %19 : vector<64x256xf32>
      %c0_10 = arith.constant 0 : index
      %c0_11 = arith.constant 0 : index
      %21 = vector.load %arg6[%c0_10, %c0_11] : memref<64x256xf32, #tpu.memory_space<vmem>>, vector<64x256xf32>
      tpu.vector_store %arg6[%c0_10, %c0_11], %20 {strides = array<i32>} : memref<64x256xf32, #tpu.memory_space<vmem>>, vector<64x256xf32>,
    } else {
    }
    return
  }
  func.func @transform_0(%arg0: i32, %arg1: i32, %arg2: i32) -> (i32, i32) {
    %c0_i32 = arith.constant 0 : i32
    %c0_i32_0 = arith.constant 0 : i32
    return %arg0, %c0_i32 : i32, i32
  }
  func.func @transform_1(%arg0: i32, %arg1: i32, %arg2: i32) -> (i32, i32) {
    %c1_i32 = arith.constant 1 : i32
    %0 = arith.subi %c1_i32, %arg1 : i32
    %1 = arith.muli %arg2, %0 : i32
    %c0_i32 = arith.constant 0 : i32
    %c0_i32_0 = arith.constant 0 : i32
    return %c0_i32, %1 : i32, i32
  }
  func.func @transform_2(%arg0: i32, %arg1: i32, %arg2: i32) -> (i32, i32) {
    %c1_i32 = arith.constant 1 : i32
    %0 = arith.subi %c1_i32, %arg1 : i32
    %1 = arith.muli %arg2, %0 : i32
    %c0_i32 = arith.constant 0 : i32
    %c0_i32_0 = arith.constant 0 : i32
    return %c0_i32, %1 : i32, i32
  }
  func.func @transform_3(%arg0: i32, %arg1: i32, %arg2: i32) -> (i32, i32) {
    %0 = arith.muli %arg2, %arg1 : i32
    %c0_i32 = arith.constant 0 : i32
    return %arg0, %0 : i32, i32
  }
}

module attributes {stable_mosaic.version = 11 : i64} {
  func.func @_rnn_fused_kernel(%arg0: i32, %arg1: i32, %arg2: memref<8x8x128xf32, #tpu.memory_space<vmem>>, %arg3: memref<128x128xf32, #tpu.memory_space<vmem>>, %arg4: memref<1x128xf32, #tpu.memory_space<vmem>>, %arg5: memref<128x128xf32, #tpu.memory_space<vmem>>, %arg6: memref<8x128xf32, #tpu.memory_space<vmem>>, %arg7: memref<8x8x128xf32, #tpu.memory_space<vmem>>, %arg8: memref<8x128xf32, #tpu.memory_space<vmem>>, %arg9: memref<8x8x128xf32, #tpu.memory_space<vmem>>, %arg10: memref<8x128xf32, #tpu.memory_space<vmem>>) attributes {dimension_semantics = [#tpu.dimension_semantics<parallel>, #tpu.dimension_semantics<arbitrary>], iteration_bounds = array<i64: 1, 1>, scalar_prefetch = 0 : i64, scratch_operands = 2 : i64, tpu.core_type = #tpu.core_type<tc>, window_params = [{transform_indices = @transform_0, window_bounds = array<i64: 8, 8, 128>}, {pipeline_mode = #tpu.pipeline_mode<synchronous>, transform_indices = @transform_1, window_bounds = array<i64: 128, 128>}, {pipeline_mode = #tpu.pipeline_mode<synchronous>, transform_indices = @transform_2, window_bounds = array<i64: 1, 128>}, {pipeline_mode = #tpu.pipeline_mode<synchronous>, transform_indices = @transform_3, window_bounds = array<i64: 128, 128>}, {transform_indices = @transform_4, window_bounds = array<i64: 8, 128>}, {transform_indices = @transform_5, window_bounds = array<i64: 8, 8, 128>}, {transform_indices = @transform_6, window_bounds = array<i64: 8, 128>}]} {
    %c0 = arith.constant 0 : index
    %c0_0 = arith.constant 0 : index
    %c0_1 = arith.constant 0 : index
    %0 = vector.load %arg2[%c0, %c0_0, %c0_1] : memref<8x8x128xf32, #tpu.memory_space<vmem>>, vector<8x8x128xf32>
    %1 = vector.shape_cast %0 : vector<8x8x128xf32> to vector<64x128xf32>
    %c0_2 = arith.constant 0 : index
    %c0_3 = arith.constant 0 : index
    %2 = vector.load %arg3[%c0_2, %c0_3] : memref<128x128xf32, #tpu.memory_space<vmem>>, vector<128x128xf32>
    %cst = arith.constant dense<0.000000e+00> : vector<64x128xf32>
    %3 = tpu.matmul %1, %2, %cst {dimension_numbers = #tpu.dot_dimension_numbers<[1], [0], [0], [1], [0, 0, 1, 1], [], []>} : vector<64x128xf32>, vector<128x128xf32>, vector<64x128xf32> -> vector<64x128xf32>
    %c0_4 = arith.constant 0 : index
    %c0_5 = arith.constant 0 : index
    %4 = vector.load %arg4[%c0_4, %c0_5] : memref<1x128xf32, #tpu.memory_space<vmem>>, vector<1x128xf32>
    %5 = vector.broadcast %4 : vector<1x128xf32> to vector<64x128xf32>
    %6 = arith.addf %3, %5 : vector<64x128xf32>
    %7 = vector.shape_cast %6 : vector<64x128xf32> to vector<8x8x128xf32>
    %c0_6 = arith.constant 0 : index
    %c0_7 = arith.constant 0 : index
    %c0_8 = arith.constant 0 : index
    %8 = vector.load %arg9[%c0_6, %c0_7, %c0_8] : memref<8x8x128xf32, #tpu.memory_space<vmem>>, vector<8x8x128xf32>
    tpu.vector_store %arg9[%c0_6, %c0_7, %c0_8], %7 {strides = array<i32>} : memref<8x8x128xf32, #tpu.memory_space<vmem>>, vector<8x8x128xf32>,
    %c0_i32 = arith.constant 0 : i32
    %9 = arith.cmpi eq, %arg1, %c0_i32 : i32
    %10 = arith.extui %9 : i1 to i32
    %c0_i32_9 = arith.constant 0 : i32
    %11 = arith.cmpi ne, %10, %c0_i32_9 : i32
    scf.if %11 {
      %c0_73 = arith.constant 0 : index
      %c0_74 = arith.constant 0 : index
      %105 = vector.load %arg6[%c0_73, %c0_74] : memref<8x128xf32, #tpu.memory_space<vmem>>, vector<8x128xf32>
      %c0_75 = arith.constant 0 : index
      %c0_76 = arith.constant 0 : index
      %106 = vector.load %arg10[%c0_75, %c0_76] : memref<8x128xf32, #tpu.memory_space<vmem>>, vector<8x128xf32>
      tpu.vector_store %arg10[%c0_75, %c0_76], %105 {strides = array<i32>} : memref<8x128xf32, #tpu.memory_space<vmem>>, vector<8x128xf32>,
    } else {
    }
    %c0_10 = arith.constant 0 : index
    %c0_11 = arith.constant 0 : index
    %12 = vector.load %arg10[%c0_10, %c0_11] : memref<8x128xf32, #tpu.memory_space<vmem>>, vector<8x128xf32>
    %c0_i32_12 = arith.constant 0 : i32
    %13 = arith.index_cast %c0_i32_12 : i32 to index
    %c0_13 = arith.constant 0 : index
    %c0_14 = arith.constant 0 : index
    %14 = vector.load %arg9[%13, %c0_13, %c0_14] : memref<8x8x128xf32, #tpu.memory_space<vmem>>, vector<1x8x128xf32>
    %15 = vector.shape_cast %14 : vector<1x8x128xf32> to vector<8x128xf32>
    %c0_15 = arith.constant 0 : index
    %c0_16 = arith.constant 0 : index
    %16 = vector.load %arg5[%c0_15, %c0_16] : memref<128x128xf32, #tpu.memory_space<vmem>>, vector<128x128xf32>
    %cst_17 = arith.constant dense<0.000000e+00> : vector<8x128xf32>
    %17 = tpu.matmul %12, %16, %cst_17 {dimension_numbers = #tpu.dot_dimension_numbers<[1], [0], [0], [1], [0, 0, 1, 1], [], []>} : vector<8x128xf32>, vector<128x128xf32>, vector<8x128xf32> -> vector<8x128xf32>
    %18 = arith.addf %15, %17 : vector<8x128xf32>
    %19 = math.tanh %18 : vector<8x128xf32>
    %20 = arith.index_cast %c0_i32_12 : i32 to index
    %c0_18 = arith.constant 0 : index
    %c0_19 = arith.constant 0 : index
    %21 = vector.load %arg7[%20, %c0_18, %c0_19] : memref<8x8x128xf32, #tpu.memory_space<vmem>>, vector<1x8x128xf32>
    %22 = vector.shape_cast %21 : vector<1x8x128xf32> to vector<8x128xf32>
    %23 = vector.shape_cast %19 : vector<8x128xf32> to vector<1x8x128xf32>
    tpu.vector_store %arg7[%20, %c0_18, %c0_19], %23 {strides = array<i32>} : memref<8x8x128xf32, #tpu.memory_space<vmem>>, vector<1x8x128xf32>,
    %c1_i32 = arith.constant 1 : i32
    %24 = arith.index_cast %c1_i32 : i32 to index
    %c0_20 = arith.constant 0 : index
    %c0_21 = arith.constant 0 : index
    %25 = vector.load %arg9[%24, %c0_20, %c0_21] : memref<8x8x128xf32, #tpu.memory_space<vmem>>, vector<1x8x128xf32>
    %26 = vector.shape_cast %25 : vector<1x8x128xf32> to vector<8x128xf32>
    %c0_22 = arith.constant 0 : index
    %c0_23 = arith.constant 0 : index
    %27 = vector.load %arg5[%c0_22, %c0_23] : memref<128x128xf32, #tpu.memory_space<vmem>>, vector<128x128xf32>
    %cst_24 = arith.constant dense<0.000000e+00> : vector<8x128xf32>
    %28 = tpu.matmul %19, %27, %cst_24 {dimension_numbers = #tpu.dot_dimension_numbers<[1], [0], [0], [1], [0, 0, 1, 1], [], []>} : vector<8x128xf32>, vector<128x128xf32>, vector<8x128xf32> -> vector<8x128xf32>
    %29 = arith.addf %26, %28 : vector<8x128xf32>
    %30 = math.tanh %29 : vector<8x128xf32>
    %31 = arith.index_cast %c1_i32 : i32 to index
    %c0_25 = arith.constant 0 : index
    %c0_26 = arith.constant 0 : index
    %32 = vector.load %arg7[%31, %c0_25, %c0_26] : memref<8x8x128xf32, #tpu.memory_space<vmem>>, vector<1x8x128xf32>
    %33 = vector.shape_cast %32 : vector<1x8x128xf32> to vector<8x128xf32>
    %34 = vector.shape_cast %30 : vector<8x128xf32> to vector<1x8x128xf32>
    tpu.vector_store %arg7[%31, %c0_25, %c0_26], %34 {strides = array<i32>} : memref<8x8x128xf32, #tpu.memory_space<vmem>>, vector<1x8x128xf32>,
    %c2_i32 = arith.constant 2 : i32
    %35 = arith.index_cast %c2_i32 : i32 to index
    %c0_27 = arith.constant 0 : index
    %c0_28 = arith.constant 0 : index
    %36 = vector.load %arg9[%35, %c0_27, %c0_28] : memref<8x8x128xf32, #tpu.memory_space<vmem>>, vector<1x8x128xf32>
    %37 = vector.shape_cast %36 : vector<1x8x128xf32> to vector<8x128xf32>
    %c0_29 = arith.constant 0 : index
    %c0_30 = arith.constant 0 : index
    %38 = vector.load %arg5[%c0_29, %c0_30] : memref<128x128xf32, #tpu.memory_space<vmem>>, vector<128x128xf32>
    %cst_31 = arith.constant dense<0.000000e+00> : vector<8x128xf32>
    %39 = tpu.matmul %30, %38, %cst_31 {dimension_numbers = #tpu.dot_dimension_numbers<[1], [0], [0], [1], [0, 0, 1, 1], [], []>} : vector<8x128xf32>, vector<128x128xf32>, vector<8x128xf32> -> vector<8x128xf32>
    %40 = arith.addf %37, %39 : vector<8x128xf32>
    %41 = math.tanh %40 : vector<8x128xf32>
    %42 = arith.index_cast %c2_i32 : i32 to index
    %c0_32 = arith.constant 0 : index
    %c0_33 = arith.constant 0 : index
    %43 = vector.load %arg7[%42, %c0_32, %c0_33] : memref<8x8x128xf32, #tpu.memory_space<vmem>>, vector<1x8x128xf32>
    %44 = vector.shape_cast %43 : vector<1x8x128xf32> to vector<8x128xf32>
    %45 = vector.shape_cast %41 : vector<8x128xf32> to vector<1x8x128xf32>
    tpu.vector_store %arg7[%42, %c0_32, %c0_33], %45 {strides = array<i32>} : memref<8x8x128xf32, #tpu.memory_space<vmem>>, vector<1x8x128xf32>,
    %c3_i32 = arith.constant 3 : i32
    %46 = arith.index_cast %c3_i32 : i32 to index
    %c0_34 = arith.constant 0 : index
    %c0_35 = arith.constant 0 : index
    %47 = vector.load %arg9[%46, %c0_34, %c0_35] : memref<8x8x128xf32, #tpu.memory_space<vmem>>, vector<1x8x128xf32>
    %48 = vector.shape_cast %47 : vector<1x8x128xf32> to vector<8x128xf32>
    %c0_36 = arith.constant 0 : index
    %c0_37 = arith.constant 0 : index
    %49 = vector.load %arg5[%c0_36, %c0_37] : memref<128x128xf32, #tpu.memory_space<vmem>>, vector<128x128xf32>
    %cst_38 = arith.constant dense<0.000000e+00> : vector<8x128xf32>
    %50 = tpu.matmul %41, %49, %cst_38 {dimension_numbers = #tpu.dot_dimension_numbers<[1], [0], [0], [1], [0, 0, 1, 1], [], []>} : vector<8x128xf32>, vector<128x128xf32>, vector<8x128xf32> -> vector<8x128xf32>
    %51 = arith.addf %48, %50 : vector<8x128xf32>
    %52 = math.tanh %51 : vector<8x128xf32>
    %53 = arith.index_cast %c3_i32 : i32 to index
    %c0_39 = arith.constant 0 : index
    %c0_40 = arith.constant 0 : index
    %54 = vector.load %arg7[%53, %c0_39, %c0_40] : memref<8x8x128xf32, #tpu.memory_space<vmem>>, vector<1x8x128xf32>
    %55 = vector.shape_cast %54 : vector<1x8x128xf32> to vector<8x128xf32>
    %56 = vector.shape_cast %52 : vector<8x128xf32> to vector<1x8x128xf32>
    tpu.vector_store %arg7[%53, %c0_39, %c0_40], %56 {strides = array<i32>} : memref<8x8x128xf32, #tpu.memory_space<vmem>>, vector<1x8x128xf32>,
    %c4_i32 = arith.constant 4 : i32
    %57 = arith.index_cast %c4_i32 : i32 to index
    %c0_41 = arith.constant 0 : index
    %c0_42 = arith.constant 0 : index
    %58 = vector.load %arg9[%57, %c0_41, %c0_42] : memref<8x8x128xf32, #tpu.memory_space<vmem>>, vector<1x8x128xf32>
    %59 = vector.shape_cast %58 : vector<1x8x128xf32> to vector<8x128xf32>
    %c0_43 = arith.constant 0 : index
    %c0_44 = arith.constant 0 : index
    %60 = vector.load %arg5[%c0_43, %c0_44] : memref<128x128xf32, #tpu.memory_space<vmem>>, vector<128x128xf32>
    %cst_45 = arith.constant dense<0.000000e+00> : vector<8x128xf32>
    %61 = tpu.matmul %52, %60, %cst_45 {dimension_numbers = #tpu.dot_dimension_numbers<[1], [0], [0], [1], [0, 0, 1, 1], [], []>} : vector<8x128xf32>, vector<128x128xf32>, vector<8x128xf32> -> vector<8x128xf32>
    %62 = arith.addf %59, %61 : vector<8x128xf32>
    %63 = math.tanh %62 : vector<8x128xf32>
    %64 = arith.index_cast %c4_i32 : i32 to index
    %c0_46 = arith.constant 0 : index
    %c0_47 = arith.constant 0 : index
    %65 = vector.load %arg7[%64, %c0_46, %c0_47] : memref<8x8x128xf32, #tpu.memory_space<vmem>>, vector<1x8x128xf32>
    %66 = vector.shape_cast %65 : vector<1x8x128xf32> to vector<8x128xf32>
    %67 = vector.shape_cast %63 : vector<8x128xf32> to vector<1x8x128xf32>
    tpu.vector_store %arg7[%64, %c0_46, %c0_47], %67 {strides = array<i32>} : memref<8x8x128xf32, #tpu.memory_space<vmem>>, vector<1x8x128xf32>,
    %c5_i32 = arith.constant 5 : i32
    %68 = arith.index_cast %c5_i32 : i32 to index
    %c0_48 = arith.constant 0 : index
    %c0_49 = arith.constant 0 : index
    %69 = vector.load %arg9[%68, %c0_48, %c0_49] : memref<8x8x128xf32, #tpu.memory_space<vmem>>, vector<1x8x128xf32>
    %70 = vector.shape_cast %69 : vector<1x8x128xf32> to vector<8x128xf32>
    %c0_50 = arith.constant 0 : index
    %c0_51 = arith.constant 0 : index
    %71 = vector.load %arg5[%c0_50, %c0_51] : memref<128x128xf32, #tpu.memory_space<vmem>>, vector<128x128xf32>
    %cst_52 = arith.constant dense<0.000000e+00> : vector<8x128xf32>
    %72 = tpu.matmul %63, %71, %cst_52 {dimension_numbers = #tpu.dot_dimension_numbers<[1], [0], [0], [1], [0, 0, 1, 1], [], []>} : vector<8x128xf32>, vector<128x128xf32>, vector<8x128xf32> -> vector<8x128xf32>
    %73 = arith.addf %70, %72 : vector<8x128xf32>
    %74 = math.tanh %73 : vector<8x128xf32>
    %75 = arith.index_cast %c5_i32 : i32 to index
    %c0_53 = arith.constant 0 : index
    %c0_54 = arith.constant 0 : index
    %76 = vector.load %arg7[%75, %c0_53, %c0_54] : memref<8x8x128xf32, #tpu.memory_space<vmem>>, vector<1x8x128xf32>
    %77 = vector.shape_cast %76 : vector<1x8x128xf32> to vector<8x128xf32>
    %78 = vector.shape_cast %74 : vector<8x128xf32> to vector<1x8x128xf32>
    tpu.vector_store %arg7[%75, %c0_53, %c0_54], %78 {strides = array<i32>} : memref<8x8x128xf32, #tpu.memory_space<vmem>>, vector<1x8x128xf32>,
    %c6_i32 = arith.constant 6 : i32
    %79 = arith.index_cast %c6_i32 : i32 to index
    %c0_55 = arith.constant 0 : index
    %c0_56 = arith.constant 0 : index
    %80 = vector.load %arg9[%79, %c0_55, %c0_56] : memref<8x8x128xf32, #tpu.memory_space<vmem>>, vector<1x8x128xf32>
    %81 = vector.shape_cast %80 : vector<1x8x128xf32> to vector<8x128xf32>
    %c0_57 = arith.constant 0 : index
    %c0_58 = arith.constant 0 : index
    %82 = vector.load %arg5[%c0_57, %c0_58] : memref<128x128xf32, #tpu.memory_space<vmem>>, vector<128x128xf32>
    %cst_59 = arith.constant dense<0.000000e+00> : vector<8x128xf32>
    %83 = tpu.matmul %74, %82, %cst_59 {dimension_numbers = #tpu.dot_dimension_numbers<[1], [0], [0], [1], [0, 0, 1, 1], [], []>} : vector<8x128xf32>, vector<128x128xf32>, vector<8x128xf32> -> vector<8x128xf32>
    %84 = arith.addf %81, %83 : vector<8x128xf32>
    %85 = math.tanh %84 : vector<8x128xf32>
    %86 = arith.index_cast %c6_i32 : i32 to index
    %c0_60 = arith.constant 0 : index
    %c0_61 = arith.constant 0 : index
    %87 = vector.load %arg7[%86, %c0_60, %c0_61] : memref<8x8x128xf32, #tpu.memory_space<vmem>>, vector<1x8x128xf32>
    %88 = vector.shape_cast %87 : vector<1x8x128xf32> to vector<8x128xf32>
    %89 = vector.shape_cast %85 : vector<8x128xf32> to vector<1x8x128xf32>
    tpu.vector_store %arg7[%86, %c0_60, %c0_61], %89 {strides = array<i32>} : memref<8x8x128xf32, #tpu.memory_space<vmem>>, vector<1x8x128xf32>,
    %c7_i32 = arith.constant 7 : i32
    %90 = arith.index_cast %c7_i32 : i32 to index
    %c0_62 = arith.constant 0 : index
    %c0_63 = arith.constant 0 : index
    %91 = vector.load %arg9[%90, %c0_62, %c0_63] : memref<8x8x128xf32, #tpu.memory_space<vmem>>, vector<1x8x128xf32>
    %92 = vector.shape_cast %91 : vector<1x8x128xf32> to vector<8x128xf32>
    %c0_64 = arith.constant 0 : index
    %c0_65 = arith.constant 0 : index
    %93 = vector.load %arg5[%c0_64, %c0_65] : memref<128x128xf32, #tpu.memory_space<vmem>>, vector<128x128xf32>
    %cst_66 = arith.constant dense<0.000000e+00> : vector<8x128xf32>
    %94 = tpu.matmul %85, %93, %cst_66 {dimension_numbers = #tpu.dot_dimension_numbers<[1], [0], [0], [1], [0, 0, 1, 1], [], []>} : vector<8x128xf32>, vector<128x128xf32>, vector<8x128xf32> -> vector<8x128xf32>
    %95 = arith.addf %92, %94 : vector<8x128xf32>
    %96 = math.tanh %95 : vector<8x128xf32>
    %97 = arith.index_cast %c7_i32 : i32 to index
    %c0_67 = arith.constant 0 : index
    %c0_68 = arith.constant 0 : index
    %98 = vector.load %arg7[%97, %c0_67, %c0_68] : memref<8x8x128xf32, #tpu.memory_space<vmem>>, vector<1x8x128xf32>
    %99 = vector.shape_cast %98 : vector<1x8x128xf32> to vector<8x128xf32>
    %100 = vector.shape_cast %96 : vector<8x128xf32> to vector<1x8x128xf32>
    tpu.vector_store %arg7[%97, %c0_67, %c0_68], %100 {strides = array<i32>} : memref<8x8x128xf32, #tpu.memory_space<vmem>>, vector<1x8x128xf32>,
    %c8_i32 = arith.constant 8 : i32
    %c0_69 = arith.constant 0 : index
    %c0_70 = arith.constant 0 : index
    %101 = vector.load %arg10[%c0_69, %c0_70] : memref<8x128xf32, #tpu.memory_space<vmem>>, vector<8x128xf32>
    tpu.vector_store %arg10[%c0_69, %c0_70], %96 {strides = array<i32>} : memref<8x128xf32, #tpu.memory_space<vmem>>, vector<8x128xf32>,
    %c0_i32_71 = arith.constant 0 : i32
    %102 = arith.cmpi eq, %arg1, %c0_i32_71 : i32
    %103 = arith.extui %102 : i1 to i32
    %c0_i32_72 = arith.constant 0 : i32
    %104 = arith.cmpi ne, %103, %c0_i32_72 : i32
    scf.if %104 {
      %c0_73 = arith.constant 0 : index
      %c0_74 = arith.constant 0 : index
      %105 = vector.load %arg8[%c0_73, %c0_74] : memref<8x128xf32, #tpu.memory_space<vmem>>, vector<8x128xf32>
      tpu.vector_store %arg8[%c0_73, %c0_74], %96 {strides = array<i32>} : memref<8x128xf32, #tpu.memory_space<vmem>>, vector<8x128xf32>,
    } else {
    }
    return
  }
  func.func @transform_0(%arg0: i32, %arg1: i32) -> (i32, i32, i32) {
    %c0_i32 = arith.constant 0 : i32
    %c0_i32_0 = arith.constant 0 : i32
    return %arg1, %arg0, %c0_i32 : i32, i32, i32
  }
  func.func @transform_1(%arg0: i32, %arg1: i32) -> (i32, i32) {
    %c0_i32 = arith.constant 0 : i32
    %c0_i32_0 = arith.constant 0 : i32
    %c0_i32_1 = arith.constant 0 : i32
    return %c0_i32, %c0_i32_0 : i32, i32
  }
  func.func @transform_2(%arg0: i32, %arg1: i32) -> (i32, i32) {
    %c0_i32 = arith.constant 0 : i32
    %c0_i32_0 = arith.constant 0 : i32
    %c0_i32_1 = arith.constant 0 : i32
    return %c0_i32, %c0_i32_0 : i32, i32
  }
  func.func @transform_3(%arg0: i32, %arg1: i32) -> (i32, i32) {
    %c0_i32 = arith.constant 0 : i32
    %c0_i32_0 = arith.constant 0 : i32
    %c0_i32_1 = arith.constant 0 : i32
    return %c0_i32, %c0_i32_0 : i32, i32
  }
  func.func @transform_4(%arg0: i32, %arg1: i32) -> (i32, i32) {
    %c0_i32 = arith.constant 0 : i32
    %c0_i32_0 = arith.constant 0 : i32
    return %arg0, %c0_i32 : i32, i32
  }
  func.func @transform_5(%arg0: i32, %arg1: i32) -> (i32, i32, i32) {
    %c0_i32 = arith.constant 0 : i32
    %c0_i32_0 = arith.constant 0 : i32
    return %arg1, %arg0, %c0_i32 : i32, i32, i32
  }
  func.func @transform_6(%arg0: i32, %arg1: i32) -> (i32, i32) {
    %c0_i32 = arith.constant 0 : i32
    %c0_i32_0 = arith.constant 0 : i32
    return %arg0, %c0_i32 : i32, i32
  }
}

</mosaic_0001>

<llo_original>
// kernel: srn_forward.5
$region0: #{srn_forward.5}
  #allocation0 [shape = 'u32[]', space=smem, size = 0x4, offset = 0x4, fixed_abs, tag = 'smem constant byte address 0x4 - core index']
  #allocation1 [shape = 'u32[144,128]{1,0:T(1,128)}', space=vmem, size = 0x12000, scoped, tag = 'internal scratch']
  #allocation2 [shape = 'f32[64,1]{1,0:T(8,128)}', space=vmem, size = 0x8000, scoped, tag = 'scratch operand']
  #allocation3 [shape = 'f32[64,1]{1,0:T(8,128)}', space=vmem, size = 0x8000, scoped, tag = 'scratch operand']
  #allocation4 [shape = 'f32[1,64,256]{2,1,0:T(8,128)}', space=vmem, size = 0x10000, scoped, tag = 'scratch operand']
  %s0 = inlined_call_operand.vmem [shape: f32[64,128], index: 0, kind: input, shape index: {}]
  %s1 = inlined_call_operand.vmem [shape: f32[128,256], index: 1, kind: input, shape index: {}]
  %s2 = inlined_call_operand.vmem [shape: f32[1,256], index: 2, kind: input, shape index: {}]
  %s3 = inlined_call_operand.vmem [shape: f32[64,256], index: 3, kind: output, shape index: {}]
  %s4 = sld [smem:[#allocation0]]
  $region57: #{srn_forward.5} parent=0
    _
  %s6 = ssub.s32 1, %s4
  %s7 = scalar_select 0, %s6, %s4
  loop: start=0, step=1, limit=4
  $region2: #{srn_forward.5} parent=0 // loop_pre_header
    _
  $region3: #{srn_forward.5} parent=0 // loop_header
    %s9 = sphi 0, %s13
    %p10 = scmp.ge.s32.totalorder %s9, 4
    %s16 = sphi 0, %s35
    %s17 = sphi 0, %s31
    %s18 = sphi 0, %s27
    %s19 = sphi 0, %s16
    %s20 = sphi 0, %s17
    %s21 = sphi 0, %s18
    %s22 = sphi 0, %s19
    %s23 = sphi 0, %s20
    %s24 = sphi 0, %s21
    %s38 = sphi 0, %s40
    %s41 = sphi 0, %s38
    %s42 = sphi 0, %s41
    %s58 = sphi 0, %s42
    %s68 = sphi 0, %s70
    %s71 = sphi 0, %s68
    %s72 = sphi 0, %s71
    %s88 = sphi 0, %s72
    %s98 = sphi 0, %s100
    %s101 = sphi 0, %s98
    %s102 = sphi 0, %s101
    %s118 = sphi 0, %s102
    %s128 = sphi 0, %s130
    %s131 = sphi 0, %s128
    %s132 = sphi 0, %s131
    %s148 = sphi 0, %s132
  $region4: #{srn_forward.5} parent=0 // loop_header_branch
    %12 = sbr.rel (%p10) target = $region8
  $region5: #{srn_forward.5} parent=0 // loop_body
    %s14 = ssub.s32 %s9, 1
    %s15 = ssub.s32 %s9, 2
    %s25 = sadd.s32 1, %s18
    %p26 = scmp.ge.s32.totalorder %s25, 1
    %s27 = scalar_select %p26, 0, %s25
    %s28 = sadd.s32 1, %s17
    %s29 = scalar_select %p26, %s28, %s17
    %p30 = scmp.ge.s32.totalorder %s29, 2
    %s31 = scalar_select %p30, 0, %s29
    %s32 = sadd.s32 1, %s16
    %s33 = scalar_select %p30, %s32, %s16
    %p34 = scmp.ge.s32.totalorder %s33, 1
    %s35 = scalar_select %p34, 0, %s33
    %s36 = ssub.s32 %s16, %s35
    %p37 = scmp.eq.s32.totalorder %s36, 0
    %s39 = sadd.s32 %s38, 1
    %s40 = scalar_select %p37, %s38, %s39
    %p43 = pneg %p37
    %p44 = scmp.eq.s32.totalorder %s9, 1
    %p45 = por %p43, %p44
    %p46 = scmp.ne.s32.totalorder %s38, %s41
    %p47 = scmp.eq.s32.totalorder %s9, 0
    %p48 = por %p46, %p47
    %p49 = scmp.ne.s32.totalorder %s38, %s41
    %p50 = scmp.eq.s32.totalorder %s14, 1
    %p51 = por %p49, %p50
    %p52 = scmp.ne.s32.totalorder %s41, %s42
    %p53 = scmp.eq.s32.totalorder %s14, 0
    %p54 = por %p52, %p53
    %p55 = scmp.ne.s32.totalorder %s41, %s42
    %p56 = scmp.eq.s32.totalorder %s15, 1
    %p57 = por %p55, %p56
    %p59 = scmp.ne.s32.totalorder %s42, %s58
    %p60 = scmp.eq.s32.totalorder %s15, 0
    %p61 = por %p59, %p60
    %s62 = ssub.s32 1, %s17
    %s63 = smul.u32 %s18, %s62
    %s64 = ssub.s32 1, %s31
    %s65 = smul.u32 %s27, %s64
    %s66 = ssub.s32 %s63, %s65
    %p67 = scmp.eq.s32.totalorder %s66, 0
    %s69 = sadd.s32 %s68, 1
    %s70 = scalar_select %p67, %s68, %s69
    %p73 = pneg %p67
    %p74 = scmp.eq.s32.totalorder %s9, 1
    %p75 = por %p73, %p74
    %p76 = scmp.ne.s32.totalorder %s68, %s71
    %p77 = scmp.eq.s32.totalorder %s9, 0
    %p78 = por %p76, %p77
    %p79 = scmp.ne.s32.totalorder %s68, %s71
    %p80 = scmp.eq.s32.totalorder %s14, 1
    %p81 = por %p79, %p80
    %p82 = scmp.ne.s32.totalorder %s71, %s72
    %p83 = scmp.eq.s32.totalorder %s14, 0
    %p84 = por %p82, %p83
    %p85 = scmp.ne.s32.totalorder %s71, %s72
    %p86 = scmp.eq.s32.totalorder %s15, 1
    %p87 = por %p85, %p86
    %p89 = scmp.ne.s32.totalorder %s72, %s88
    %p90 = scmp.eq.s32.totalorder %s15, 0
    %p91 = por %p89, %p90
    %s92 = ssub.s32 1, %s17
    %s93 = smul.u32 %s18, %s92
    %s94 = ssub.s32 1, %s31
    %s95 = smul.u32 %s27, %s94
    %s96 = ssub.s32 %s93, %s95
    %p97 = scmp.eq.s32.totalorder %s96, 0
    %s99 = sadd.s32 %s98, 1
    %s100 = scalar_select %p97, %s98, %s99
    %p103 = pneg %p97
    %p104 = scmp.eq.s32.totalorder %s9, 1
    %p105 = por %p103, %p104
    %p106 = scmp.ne.s32.totalorder %s98, %s101
    %p107 = scmp.eq.s32.totalorder %s9, 0
    %p108 = por %p106, %p107
    %p109 = scmp.ne.s32.totalorder %s98, %s101
    %p110 = scmp.eq.s32.totalorder %s14, 1
    %p111 = por %p109, %p110
    %p112 = scmp.ne.s32.totalorder %s101, %s102
    %p113 = scmp.eq.s32.totalorder %s14, 0
    %p114 = por %p112, %p113
    %p115 = scmp.ne.s32.totalorder %s101, %s102
    %p116 = scmp.eq.s32.totalorder %s15, 1
    %p117 = por %p115, %p116
    %p119 = scmp.ne.s32.totalorder %s102, %s118
    %p120 = scmp.eq.s32.totalorder %s15, 0
    %p121 = por %p119, %p120
    %s122 = smul.u32 %s18, %s17
    %s123 = smul.u32 %s27, %s31
    %s124 = ssub.s32 %s16, %s35
    %s125 = ssub.s32 %s122, %s123
    %s126 = sor.u32 %s124, %s125
    %p127 = scmp.eq.s32.totalorder %s126, 0
    %s129 = sadd.s32 %s128, 1
    %s130 = scalar_select %p127, %s128, %s129
    %p133 = pneg %p127
    %p134 = scmp.eq.s32.totalorder %s9, 1
    %p135 = por %p133, %p134
    %p136 = scmp.ne.s32.totalorder %s128, %s131
    %p137 = scmp.eq.s32.totalorder %s9, 0
    %p138 = por %p136, %p137
    %p139 = scmp.ne.s32.totalorder %s128, %s131
    %p140 = scmp.eq.s32.totalorder %s14, 1
    %p141 = por %p139, %p140
    %p142 = scmp.ne.s32.totalorder %s131, %s132
    %p143 = scmp.eq.s32.totalorder %s14, 0
    %p144 = por %p142, %p143
    %p145 = scmp.ne.s32.totalorder %s131, %s132
    %p146 = scmp.eq.s32.totalorder %s15, 1
    %p147 = por %p145, %p146
    %p149 = scmp.ne.s32.totalorder %s132, %s148
    %p150 = scmp.eq.s32.totalorder %s15, 0
    %p151 = por %p149, %p150
    %p152 = scmp.le.s32.totalorder 1, %s9
    %p153 = scmp.lt.s32.totalorder %s9, 3
    %p154 = pnand %p152, %p153
    %p155 = pneg %p154
    // Predicated region
    $region9: #{srn_forward.5} parent=5 // pred_check
      _
    $region10: #{srn_forward.5} parent=5 // pred_check_branch
      %157 = sbr.rel (%p154) target = $region12
    $region11: #{srn_forward.5} parent=5 // pred_region
      %s158 = ssub.s32 %s9, 1
      // Predicated region
      $region13: #{srn_forward.5} parent=11 // pred_check
        %p159 = pneg %p54
      $region14: #{srn_forward.5} parent=11 // pred_check_branch
        %161 = sbr.rel (%p159) target = $region16
      $region15: #{srn_forward.5} parent=11 // pred_region
        %s162 = smul.u32 8, %s19
        %p163 = scmp.lt.s32.totalorder %s162, 7
        %s164 = scalar_select %p163, %s162, 7
        %s165 = smul.addr %s164, 8
        %s166 = scalar_lea.vmem %s0, %s165
        %s167 = smul.u32 8, %s19
      $region16: #{srn_forward.5} parent=11 // pred_fallthru
        _
    $region12: #{srn_forward.5} parent=5 // pred_fallthru
      _
    %p168 = scmp.lt.s32.totalorder %s9, 2
    // Predicated region
    $region17: #{srn_forward.5} parent=5 // pred_check
      %p169 = pneg %p168
    $region18: #{srn_forward.5} parent=5 // pred_check_branch
      %171 = sbr.rel (%p169) target = $region20
    $region19: #{srn_forward.5} parent=5 // pred_region
      // Predicated region
      $region21: #{srn_forward.5} parent=19 // pred_check
        %p172 = pneg %p78
      $region22: #{srn_forward.5} parent=19 // pred_check_branch
        %174 = sbr.rel (%p172) target = $region24
      $region23: #{srn_forward.5} parent=19 // pred_region
        %s175 = ssub.s32 1, %s17
        %s176 = smul.u32 %s18, %s175
        %s177 = smul.u32 2, %s176
        %p178 = scmp.lt.s32.totalorder %s177, 1
        %s179 = scalar_select %p178, %s177, 1
        %s180 = smul.addr %s179, 8
        %s181 = scalar_lea.vmem %s1, %s180
        %s182 = ssub.s32 1, %s17
        %s183 = smul.u32 %s18, %s182
        %s184 = smul.u32 2, %s183
      $region24: #{srn_forward.5} parent=19 // pred_fallthru
        _
      // Predicated region
      $region25: #{srn_forward.5} parent=19 // pred_check
        %p185 = pneg %p108
      $region26: #{srn_forward.5} parent=19 // pred_check_branch
        %187 = sbr.rel (%p185) target = $region28
      $region27: #{srn_forward.5} parent=19 // pred_region
        %s188 = ssub.s32 1, %s17
        %s189 = smul.u32 %s18, %s188
        %s190 = smul.u32 2, %s189
        %p191 = scmp.lt.s32.totalorder %s190, 1
        %s192 = scalar_select %p191, %s190, 1
        %s193 = scalar_lea.vmem %s2, %s192
        %s194 = ssub.s32 1, %s17
        %s195 = smul.u32 %s18, %s194
        %s196 = smul.u32 2, %s195
      $region28: #{srn_forward.5} parent=19 // pred_fallthru
        _
    $region20: #{srn_forward.5} parent=5 // pred_fallthru
      _
    %p197 = scmp.le.s32.totalorder 1, %s9
    %p198 = scmp.lt.s32.totalorder %s9, 3
    %p199 = pnand %p197, %p198
    %p200 = pneg %p199
    // Predicated region
    $region29: #{srn_forward.5} parent=5 // pred_check
      _
    $region30: #{srn_forward.5} parent=5 // pred_check_branch
      %202 = sbr.rel (%p199) target = $region32
    $region31: #{srn_forward.5} parent=5 // pred_region
      %s203 = ssub.s32 %s9, 1
      %s204 = smul.u32 8, %s19
      %p205 = scmp.lt.s32.totalorder %s204, 7
      %s206 = scalar_select %p205, %s204, 7
      %s207 = smul.addr %s206, 8
      %s208 = scalar_lea.vmem %s0, %s207
      %p209 = pneg %p54
      %p210 = pneg %p51
      %s211 = ssub.s32 1, %s20
      %s212 = smul.u32 %s21, %s211
      %s213 = smul.u32 2, %s212
      %p214 = scmp.lt.s32.totalorder %s213, 1
      %s215 = scalar_select %p214, %s213, 1
      %s216 = smul.addr %s215, 8
      %s217 = scalar_lea.vmem %s1, %s216
      %p218 = pneg %p84
      %p219 = pneg %p81
      %s220 = ssub.s32 1, %s20
      %s221 = smul.u32 %s21, %s220
      %s222 = smul.u32 2, %s221
      %p223 = scmp.lt.s32.totalorder %s222, 1
      %s224 = scalar_select %p223, %s222, 1
      %s225 = scalar_lea.vmem %s2, %s224
      %p226 = pneg %p114
      %p227 = pneg %p111
      %p228 = pneg %p144
      %p229 = pneg %p141
      %s230 = smul.u32 %s21, %s20
      %s231 = smul.u32 8, %s19
      %s232 = smul.u32 2, %s230
      %p233 = scmp.lt.s32.totalorder %s231, 7
      %s234 = scalar_select %p233, %s231, 7
      %p235 = scmp.lt.s32.totalorder %s232, 1
      %s236 = scalar_select %p235, %s232, 1
      %s237 = smul.addr %s234, 2
      %s238 = sadd.s32 %s236, %s237
      %s239 = smul.addr %s238, 8
      %s240 = scalar_lea.vmem %s3, %s239
      %s241 = smul.u32 8, %s19
      %p242 = scmp.lt.s32.totalorder %s241, 7
      %s243 = scalar_select %p242, %s241, 7
      %s244 = smul.addr %s243, 8
      %s245 = scalar_lea.vmem %s0, %s244
      %s246 = smul.u32 8, %s19
      %s247 = ssub.s32 1, %s20
      %s248 = smul.u32 %s21, %s247
      %s249 = smul.u32 2, %s248
      %p250 = scmp.lt.s32.totalorder %s249, 1
      %s251 = scalar_select %p250, %s249, 1
      %s252 = smul.addr %s251, 8
      %s253 = scalar_lea.vmem %s1, %s252
      %s254 = ssub.s32 1, %s20
      %s255 = smul.u32 %s21, %s254
      %s256 = smul.u32 2, %s255
      %s257 = ssub.s32 1, %s20
      %s258 = smul.u32 %s21, %s257
      %s259 = smul.u32 2, %s258
      %p260 = scmp.lt.s32.totalorder %s259, 1
      %s261 = scalar_select %p260, %s259, 1
      %s262 = scalar_lea.vmem %s2, %s261
      %s263 = ssub.s32 1, %s20
      %s264 = smul.u32 %s21, %s263
      %s265 = smul.u32 2, %s264
      %s266 = smul.u32 %s21, %s20
      %s267 = smul.u32 8, %s19
      %s268 = smul.u32 2, %s266
      %p269 = scmp.lt.s32.totalorder %s267, 7
      %s270 = scalar_select %p269, %s267, 7
      %p271 = scmp.lt.s32.totalorder %s268, 1
      %s272 = scalar_select %p271, %s268, 1
      %s273 = smul.addr %s270, 2
      %s274 = sadd.s32 %s272, %s273
      %s275 = smul.addr %s274, 8
      %s276 = scalar_lea.vmem %s3, %s275
      %s277 = smul.u32 %s21, %s20
      %s278 = smul.u32 8, %s19
      %s279 = smul.u32 2, %s277
      %p280 = scmp.eq.s32.totalorder %s20, 0
      %p281 = scmp.eq.s32.totalorder %s21, 0
      %p282 = pnand %p280, %p281
      %p283 = pneg %p282
      // Predicated region
      $region33: #{srn_forward.5} parent=31 // pred_check
        _
      $region34: #{srn_forward.5} parent=31 // pred_check_branch
        %285 = sbr.rel (%p282) target = $region36
      $region35: #{srn_forward.5} parent=31 // pred_region
        %vm286 = vcmask 7168
        %287 = vst.msk [vmem:[#allocation2] sm:$0xff] %vm286, -inf
        %288 = vst.msk [vmem:[#allocation2 + $0x8] sm:$0xff] %vm286, -inf
        %289 = vst.msk [vmem:[#allocation2 + $0x10] sm:$0xff] %vm286, -inf
        %290 = vst.msk [vmem:[#allocation2 + $0x18] sm:$0xff] %vm286, -inf
        %291 = vst.msk [vmem:[#allocation2 + $0x20] sm:$0xff] %vm286, -inf
        %292 = vst.msk [vmem:[#allocation2 + $0x28] sm:$0xff] %vm286, -inf
        %293 = vst.msk [vmem:[#allocation2 + $0x30] sm:$0xff] %vm286, -inf
        %294 = vst.msk [vmem:[#allocation2 + $0x38] sm:$0xff] %vm286, -inf
        %295 = vst.msk [vmem:[#allocation3] sm:$0xff] %vm286, 0.0
        %296 = vst.msk [vmem:[#allocation3 + $0x8] sm:$0xff] %vm286, 0.0
        %297 = vst.msk [vmem:[#allocation3 + $0x10] sm:$0xff] %vm286, 0.0
        %298 = vst.msk [vmem:[#allocation3 + $0x18] sm:$0xff] %vm286, 0.0
        %299 = vst.msk [vmem:[#allocation3 + $0x20] sm:$0xff] %vm286, 0.0
        %300 = vst.msk [vmem:[#allocation3 + $0x28] sm:$0xff] %vm286, 0.0
        %301 = vst.msk [vmem:[#allocation3 + $0x30] sm:$0xff] %vm286, 0.0
        %302 = vst.msk [vmem:[#allocation3 + $0x38] sm:$0xff] %vm286, 0.0
      $region36: #{srn_forward.5} parent=31 // pred_fallthru
        _
      // Predicated region
      $region37: #{srn_forward.5} parent=31 // pred_check
        %p303 = pneg %p280
      $region38: #{srn_forward.5} parent=31 // pred_check_branch
        %305 = sbr.rel (%p303) target = $region40
      $region39: #{srn_forward.5} parent=31 // pred_region
        %v306 = vld [vmem:[%s245] sm:$0xff]
        %v307 = vld [vmem:[%s245 + $0x8] sm:$0xff]
        %v308 = vld [vmem:[%s245 + $0x10] sm:$0xff]
        %v309 = vld [vmem:[%s245 + $0x18] sm:$0xff]
        %v310 = vld [vmem:[%s245 + $0x20] sm:$0xff]
        %v311 = vld [vmem:[%s245 + $0x28] sm:$0xff]
        %v312 = vld [vmem:[%s245 + $0x30] sm:$0xff]
        %v313 = vld [vmem:[%s245 + $0x38] sm:$0xff]
        %v314 = vld [vmem:[%s253] sm:$0xff]
        %v315 = vld [vmem:[%s253 + $0x8] sm:$0xff]
        %v316 = vld [vmem:[%s253 + $0x10] sm:$0xff]
        %v317 = vld [vmem:[%s253 + $0x18] sm:$0xff]
        %v318 = vld [vmem:[%s253 + $0x20] sm:$0xff]
        %v319 = vld [vmem:[%s253 + $0x28] sm:$0xff]
        %v320 = vld [vmem:[%s253 + $0x30] sm:$0xff]
        %v321 = vld [vmem:[%s253 + $0x38] sm:$0xff]
        %v322 = vld [vmem:[%s253 + $0x40] sm:$0xff]
        %v323 = vld [vmem:[%s253 + $0x48] sm:$0xff]
        %v324 = vld [vmem:[%s253 + $0x50] sm:$0xff]
        %v325 = vld [vmem:[%s253 + $0x58] sm:$0xff]
        %v326 = vld [vmem:[%s253 + $0x60] sm:$0xff]
        %v327 = vld [vmem:[%s253 + $0x68] sm:$0xff]
        %v328 = vld [vmem:[%s253 + $0x70] sm:$0xff]
        %v329 = vld [vmem:[%s253 + $0x78] sm:$0xff]
        %v330 = vld [vmem:[%s253 + $0x80] sm:$0xff]
        %v331 = vld [vmem:[%s253 + $0x88] sm:$0xff]
        %v332 = vld [vmem:[%s253 + $0x90] sm:$0xff]
        %v333 = vld [vmem:[%s253 + $0x98] sm:$0xff]
        %v334 = vld [vmem:[%s253 + $0xa0] sm:$0xff]
        %v335 = vld [vmem:[%s253 + $0xa8] sm:$0xff]
        %v336 = vld [vmem:[%s253 + $0xb0] sm:$0xff]
        %v337 = vld [vmem:[%s253 + $0xb8] sm:$0xff]
        %v338 = vld [vmem:[%s253 + $0xc0] sm:$0xff]
        %v339 = vld [vmem:[%s253 + $0xc8] sm:$0xff]
        %v340 = vld [vmem:[%s253 + $0xd0] sm:$0xff]
        %v341 = vld [vmem:[%s253 + $0xd8] sm:$0xff]
        %v342 = vld [vmem:[%s253 + $0xe0] sm:$0xff]
        %v343 = vld [vmem:[%s253 + $0xe8] sm:$0xff]
        %v344 = vld [vmem:[%s253 + $0xf0] sm:$0xff]
        %v345 = vld [vmem:[%s253 + $0xf8] sm:$0xff]
        %v346 = vld [vmem:[%s262] sm:$0x3]
        %v348 = vlaneseq
        %v349 = vshrl.u32 %v348, 7
        %v350 = vsub.s32 0, %v349
        %v351 = vrot.slane %v346, %v350
        %v352 = vlaneseq
        %v353 = vshrl.u32 %v352, 7
        %v354 = vsub.s32 1, %v353
        %v355 = vrot.slane %v346, %v354
        %358 = vmatprep.subr.mxu0 %v345
        %359 = vmatpush1.msra.mxu0 %v344
        %360 = vmatprep.subr.mxu0 %v343
        %361 = vmatpush1.msra.mxu0 %v342
        %362 = vmatprep.subr.mxu0 %v341
        %363 = vmatpush1.msra.mxu0 %v340
        %364 = vmatprep.subr.mxu0 %v339
        %365 = vmatpush1.msra.mxu0 %v338
        %366 = vmatprep.subr.mxu0 %v337
        %367 = vmatpush1.msra.mxu0 %v336
        %368 = vmatprep.subr.mxu0 %v335
        %369 = vmatpush1.msra.mxu0 %v334
        %370 = vmatprep.subr.mxu0 %v333
        %371 = vmatpush1.msra.mxu0 %v332
        %372 = vmatprep.subr.mxu0 %v331
        %373 = vmatpush1.msra.mxu0 %v330
        %374 = vmatprep.subr.mxu0 %v329
        %375 = vmatpush1.msra.mxu0 %v328
        %376 = vmatprep.subr.mxu0 %v327
        %377 = vmatpush1.msra.mxu0 %v326
        %378 = vmatprep.subr.mxu0 %v325
        %379 = vmatpush1.msra.mxu0 %v324
        %380 = vmatprep.subr.mxu0 %v323
        %381 = vmatpush1.msra.mxu0 %v322
        %382 = vmatprep.subr.mxu0 %v321
        %383 = vmatpush1.msra.mxu0 %v320
        %384 = vmatprep.subr.mxu0 %v319
        %385 = vmatpush1.msra.mxu0 %v318
        %386 = vmatprep.subr.mxu0 %v317
        %387 = vmatpush1.msra.mxu0 %v316
        %388 = vmatprep.subr.mxu0 %v315
        %389 = vmatpush1.msra.mxu0 %v314
        %390 = vmatprep.subr.mxu0 0.0
        %391 = vmatpush2.msra.mxu0 0.0
        %392 = vmatprep.subr.mxu0 0.0
        %393 = vmatpush2.msra.mxu0 0.0
        %394 = vmatprep.subr.mxu0 0.0
        %395 = vmatpush2.msra.mxu0 0.0
        %396 = vmatprep.subr.mxu0 0.0
        %397 = vmatpush2.msra.mxu0 0.0
        %398 = vmatprep.subr.mxu0 0.0
        %399 = vmatpush2.msra.mxu0 0.0
        %400 = vmatprep.subr.mxu0 0.0
        %401 = vmatpush2.msra.mxu0 0.0
        %402 = vmatprep.subr.mxu0 0.0
        %403 = vmatpush2.msra.mxu0 0.0
        %404 = vmatprep.subr.mxu0 0.0
        %405 = vmatpush2.msra.mxu0 0.0
        %406 = vmatprep.subr.mxu0 0.0
        %407 = vmatpush2.msra.mxu0 0.0
        %408 = vmatprep.subr.mxu0 0.0
        %409 = vmatpush2.msra.mxu0 0.0
        %410 = vmatprep.subr.mxu0 0.0
        %411 = vmatpush2.msra.mxu0 0.0
        %412 = vmatprep.subr.mxu0 0.0
        %413 = vmatpush2.msra.mxu0 0.0
        %414 = vmatprep.subr.mxu0 0.0
        %415 = vmatpush2.msra.mxu0 0.0
        %416 = vmatprep.subr.mxu0 0.0
        %417 = vmatpush2.msra.mxu0 0.0
        %418 = vmatprep.subr.mxu0 0.0
        %419 = vmatpush2.msra.mxu0 0.0
        %420 = vmatprep.subr.mxu0 0.0
        %421 = vmatpush2.msra.mxu0 0.0
        %422 = vmatprep.mubr.f32.mxu0 0.0
        %423 = vmatmul.mubr.f32.gmra.mxu0 %v306
        %v424 = vpop.f32.mrf.mxu0
        %v425 = vadd.f32 %v351, %v424
        %v426 = vpop.f32.mrf.mxu0
        %v427 = vadd.f32 %v355, %v426
        %428 = vmatprep.mubr.f32.mxu0 0.0
        %429 = vmatmul.mubr.f32.gmra.mxu0 %v307
        %v430 = vpop.f32.mrf.mxu0
        %v431 = vadd.f32 %v351, %v430
        %v432 = vpop.f32.mrf.mxu0
        %v433 = vadd.f32 %v355, %v432
        %434 = vmatprep.mubr.f32.mxu0 0.0
        %435 = vmatmul.mubr.f32.gmra.mxu0 %v308
        %v436 = vpop.f32.mrf.mxu0
        %v437 = vadd.f32 %v351, %v436
        %v438 = vpop.f32.mrf.mxu0
        %v439 = vadd.f32 %v355, %v438
        %440 = vmatprep.mubr.f32.mxu0 0.0
        %441 = vmatmul.mubr.f32.gmra.mxu0 %v309
        %v442 = vpop.f32.mrf.mxu0
        %v443 = vadd.f32 %v351, %v442
        %v444 = vpop.f32.mrf.mxu0
        %v445 = vadd.f32 %v355, %v444
        %446 = vmatprep.mubr.f32.mxu0 0.0
        %447 = vmatmul.mubr.f32.gmra.mxu0 %v310
        %v448 = vpop.f32.mrf.mxu0
        %v449 = vadd.f32 %v351, %v448
        %v450 = vpop.f32.mrf.mxu0
        %v451 = vadd.f32 %v355, %v450
        %452 = vmatprep.mubr.f32.mxu0 0.0
        %453 = vmatmul.mubr.f32.gmra.mxu0 %v311
        %v454 = vpop.f32.mrf.mxu0
        %v455 = vadd.f32 %v351, %v454
        %v456 = vpop.f32.mrf.mxu0
        %v457 = vadd.f32 %v355, %v456
        %458 = vmatprep.mubr.f32.mxu0 0.0
        %459 = vmatmul.mubr.f32.gmra.mxu0 %v312
        %v460 = vpop.f32.mrf.mxu0
        %v461 = vadd.f32 %v351, %v460
        %v462 = vpop.f32.mrf.mxu0
        %v463 = vadd.f32 %v355, %v462
        %464 = vmatprep.mubr.f32.mxu0 0.0
        %465 = vmatmul.mubr.f32.gmra.mxu0 %v313
        %v466 = vpop.f32.mrf.mxu0
        %v467 = vadd.f32 %v351, %v466
        %v468 = vpop.f32.mrf.mxu0
        %v469 = vadd.f32 %v355, %v468
        %470 = vdwg.mxu0
        %s471 = smul.u32 %s21, 16
        %s472 = smul.addr %s471, 8
        %s473 = scalar_lea.vmem [#allocation4], %s472
        %474 = vst [vmem:[%s473] sm:$0xff] %v425
        %475 = vst [vmem:[%s473 + $0x8] sm:$0xff] %v427
        %476 = vst [vmem:[%s473 + $0x10] sm:$0xff] %v431
        %477 = vst [vmem:[%s473 + $0x18] sm:$0xff] %v433
        %478 = vst [vmem:[%s473 + $0x20] sm:$0xff] %v437
        %479 = vst [vmem:[%s473 + $0x28] sm:$0xff] %v439
        %480 = vst [vmem:[%s473 + $0x30] sm:$0xff] %v443
        %481 = vst [vmem:[%s473 + $0x38] sm:$0xff] %v445
        %482 = vst [vmem:[%s473 + $0x40] sm:$0xff] %v449
        %483 = vst [vmem:[%s473 + $0x48] sm:$0xff] %v451
        %484 = vst [vmem:[%s473 + $0x50] sm:$0xff] %v455
        %485 = vst [vmem:[%s473 + $0x58] sm:$0xff] %v457
        %486 = vst [vmem:[%s473 + $0x60] sm:$0xff] %v461
        %487 = vst [vmem:[%s473 + $0x68] sm:$0xff] %v463
        %488 = vst [vmem:[%s473 + $0x70] sm:$0xff] %v467
        %489 = vst [vmem:[%s473 + $0x78] sm:$0xff] %v469
        %v490 = vld [vmem:[#allocation2] sm:$0xff]
        %v491 = vld [vmem:[#allocation2 + $0x8] sm:$0xff]
        %v492 = vld [vmem:[#allocation2 + $0x10] sm:$0xff]
        %v493 = vld [vmem:[#allocation2 + $0x18] sm:$0xff]
        %v494 = vld [vmem:[#allocation2 + $0x20] sm:$0xff]
        %v495 = vld [vmem:[#allocation2 + $0x28] sm:$0xff]
        %v496 = vld [vmem:[#allocation2 + $0x30] sm:$0xff]
        %v497 = vld [vmem:[#allocation2 + $0x38] sm:$0xff]
        %v498 = vmax.f32 %v425, %v427
        %499 = vmax.xlane.f32.xlu0 %v498
        %v500 = vpop.xlane.xlu0 %499
        %v501 = vmax.f32 %v431, %v433
        %502 = vmax.xlane.f32.xlu0 %v501
        %v503 = vpop.xlane.xlu0 %502
        %v504 = vmax.f32 %v437, %v439
        %505 = vmax.xlane.f32.xlu0 %v504
        %v506 = vpop.xlane.xlu0 %505
        %v507 = vmax.f32 %v443, %v445
        %508 = vmax.xlane.f32.xlu0 %v507
        %v509 = vpop.xlane.xlu0 %508
        %v510 = vmax.f32 %v449, %v451
        %511 = vmax.xlane.f32.xlu0 %v510
        %v512 = vpop.xlane.xlu0 %511
        %v513 = vmax.f32 %v455, %v457
        %514 = vmax.xlane.f32.xlu0 %v513
        %v515 = vpop.xlane.xlu0 %514
        %v516 = vmax.f32 %v461, %v463
        %517 = vmax.xlane.f32.xlu0 %v516
        %v518 = vpop.xlane.xlu0 %517
        %v519 = vmax.f32 %v467, %v469
        %520 = vmax.xlane.f32.xlu0 %v519
        %v521 = vpop.xlane.xlu0 %520
        %v522 = vmax.f32 %v490, %v500
        %v523 = vmax.f32 %v491, %v503
        %v524 = vmax.f32 %v492, %v506
        %v525 = vmax.f32 %v493, %v509
        %v526 = vmax.f32 %v494, %v512
        %v527 = vmax.f32 %v495, %v515
        %v528 = vmax.f32 %v496, %v518
        %v529 = vmax.f32 %v497, %v521
        %v530 = vld [vmem:[#allocation3] sm:$0xff]
        %v531 = vld [vmem:[#allocation3 + $0x8] sm:$0xff]
        %v532 = vld [vmem:[#allocation3 + $0x10] sm:$0xff]
        %v533 = vld [vmem:[#allocation3 + $0x18] sm:$0xff]
        %v534 = vld [vmem:[#allocation3 + $0x20] sm:$0xff]
        %v535 = vld [vmem:[#allocation3 + $0x28] sm:$0xff]
        %v536 = vld [vmem:[#allocation3 + $0x30] sm:$0xff]
        %v537 = vld [vmem:[#allocation3 + $0x38] sm:$0xff]
        %v538 = vsub.f32 %v490, %v522
        %v539 = vsub.f32 %v491, %v523
        %v540 = vsub.f32 %v492, %v524
        %v541 = vsub.f32 %v493, %v525
        %v542 = vsub.f32 %v494, %v526
        %v543 = vsub.f32 %v495, %v527
        %v544 = vsub.f32 %v496, %v528
        %v545 = vsub.f32 %v497, %v529
        %v546 = vmul.f32 %v538, 1.442695
        %v547 = vpow.pop %v546
        %v548 = vmul.f32 %v539, 1.442695
        %v549 = vpow.pop %v548
        %v550 = vmul.f32 %v540, 1.442695
        %v551 = vpow.pop %v550
        %v552 = vmul.f32 %v541, 1.442695
        %v553 = vpow.pop %v552
        %v554 = vmul.f32 %v542, 1.442695
        %v555 = vpow.pop %v554
        %v556 = vmul.f32 %v543, 1.442695
        %v557 = vpow.pop %v556
        %v558 = vmul.f32 %v544, 1.442695
        %v559 = vpow.pop %v558
        %v560 = vmul.f32 %v545, 1.442695
        %v561 = vpow.pop %v560
        %v562 = vmul.f32 %v530, %v547
        %v563 = vmul.f32 %v531, %v549
        %v564 = vmul.f32 %v532, %v551
        %v565 = vmul.f32 %v533, %v553
        %v566 = vmul.f32 %v534, %v555
        %v567 = vmul.f32 %v535, %v557
        %v568 = vmul.f32 %v536, %v559
        %v569 = vmul.f32 %v537, %v561
        %571 = vset.pattern.permute.xlu0 0
        %572 = vperm.xlu0 %571, %v522
        %v573 = vpop.permute.xlu0 %572
        %576 = vset.pattern.permute.xlu0 0
        %577 = vperm.xlu0 %576, %v523
        %v578 = vpop.permute.xlu0 %577
        %581 = vset.pattern.permute.xlu0 0
        %582 = vperm.xlu0 %581, %v524
        %v583 = vpop.permute.xlu0 %582
        %586 = vset.pattern.permute.xlu0 0
        %587 = vperm.xlu0 %586, %v525
        %v588 = vpop.permute.xlu0 %587
        %591 = vset.pattern.permute.xlu0 0
        %592 = vperm.xlu0 %591, %v526
        %v593 = vpop.permute.xlu0 %592
        %596 = vset.pattern.permute.xlu0 0
        %597 = vperm.xlu0 %596, %v527
        %v598 = vpop.permute.xlu0 %597
        %601 = vset.pattern.permute.xlu0 0
        %602 = vperm.xlu0 %601, %v528
        %v603 = vpop.permute.xlu0 %602
        %606 = vset.pattern.permute.xlu0 0
        %607 = vperm.xlu0 %606, %v529
        %v608 = vpop.permute.xlu0 %607
        %v610 = vsub.f32 %v425, %v573
        %v611 = vsub.f32 %v427, %v573
        %v612 = vsub.f32 %v431, %v578
        %v613 = vsub.f32 %v433, %v578
        %v614 = vsub.f32 %v437, %v583
        %v615 = vsub.f32 %v439, %v583
        %v616 = vsub.f32 %v443, %v588
        %v617 = vsub.f32 %v445, %v588
        %v618 = vsub.f32 %v449, %v593
        %v619 = vsub.f32 %v451, %v593
        %v620 = vsub.f32 %v455, %v598
        %v621 = vsub.f32 %v457, %v598
        %v622 = vsub.f32 %v461, %v603
        %v623 = vsub.f32 %v463, %v603
        %v624 = vsub.f32 %v467, %v608
        %v625 = vsub.f32 %v469, %v608
        %v626 = vmul.f32 %v610, 1.442695
        %v627 = vpow.pop %v626
        %v628 = vmul.f32 %v611, 1.442695
        %v629 = vpow.pop %v628
        %v630 = vmul.f32 %v612, 1.442695
        %v631 = vpow.pop %v630
        %v632 = vmul.f32 %v613, 1.442695
        %v633 = vpow.pop %v632
        %v634 = vmul.f32 %v614, 1.442695
        %v635 = vpow.pop %v634
        %v636 = vmul.f32 %v615, 1.442695
        %v637 = vpow.pop %v636
        %v638 = vmul.f32 %v616, 1.442695
        %v639 = vpow.pop %v638
        %v640 = vmul.f32 %v617, 1.442695
        %v641 = vpow.pop %v640
        %v642 = vmul.f32 %v618, 1.442695
        %v643 = vpow.pop %v642
        %v644 = vmul.f32 %v619, 1.442695
        %v645 = vpow.pop %v644
        %v646 = vmul.f32 %v620, 1.442695
        %v647 = vpow.pop %v646
        %v648 = vmul.f32 %v621, 1.442695
        %v649 = vpow.pop %v648
        %v650 = vmul.f32 %v622, 1.442695
        %v651 = vpow.pop %v650
        %v652 = vmul.f32 %v623, 1.442695
        %v653 = vpow.pop %v652
        %v654 = vmul.f32 %v624, 1.442695
        %v655 = vpow.pop %v654
        %v656 = vmul.f32 %v625, 1.442695
        %v657 = vpow.pop %v656
        %v658 = vadd.f32 %v627, %v629
        %659 = vadd.xlane.f32.xlu0 %v658
        %v660 = vpop.xlane.xlu0 %659
        %v661 = vadd.f32 %v631, %v633
        %662 = vadd.xlane.f32.xlu0 %v661
        %v663 = vpop.xlane.xlu0 %662
        %v664 = vadd.f32 %v635, %v637
        %665 = vadd.xlane.f32.xlu0 %v664
        %v666 = vpop.xlane.xlu0 %665
        %v667 = vadd.f32 %v639, %v641
        %668 = vadd.xlane.f32.xlu0 %v667
        %v669 = vpop.xlane.xlu0 %668
        %v670 = vadd.f32 %v643, %v645
        %671 = vadd.xlane.f32.xlu0 %v670
        %v672 = vpop.xlane.xlu0 %671
        %v673 = vadd.f32 %v647, %v649
        %674 = vadd.xlane.f32.xlu0 %v673
        %v675 = vpop.xlane.xlu0 %674
        %v676 = vadd.f32 %v651, %v653
        %677 = vadd.xlane.f32.xlu0 %v676
        %v678 = vpop.xlane.xlu0 %677
        %v679 = vadd.f32 %v655, %v657
        %680 = vadd.xlane.f32.xlu0 %v679
        %v681 = vpop.xlane.xlu0 %680
        %v682 = vadd.f32 %v562, %v660
        %v683 = vadd.f32 %v563, %v663
        %v684 = vadd.f32 %v564, %v666
        %v685 = vadd.f32 %v565, %v669
        %v686 = vadd.f32 %v566, %v672
        %v687 = vadd.f32 %v567, %v675
        %v688 = vadd.f32 %v568, %v678
        %v689 = vadd.f32 %v569, %v681
        %vm690 = vcmask 7168
        %691 = vst.msk [vmem:[#allocation3] sm:$0xff] %vm690, %v682
        %692 = vst.msk [vmem:[#allocation3 + $0x8] sm:$0xff] %vm690, %v683
        %693 = vst.msk [vmem:[#allocation3 + $0x10] sm:$0xff] %vm690, %v684
        %694 = vst.msk [vmem:[#allocation3 + $0x18] sm:$0xff] %vm690, %v685
        %695 = vst.msk [vmem:[#allocation3 + $0x20] sm:$0xff] %vm690, %v686
        %696 = vst.msk [vmem:[#allocation3 + $0x28] sm:$0xff] %vm690, %v687
        %697 = vst.msk [vmem:[#allocation3 + $0x30] sm:$0xff] %vm690, %v688
        %698 = vst.msk [vmem:[#allocation3 + $0x38] sm:$0xff] %vm690, %v689
        %699 = vst.msk [vmem:[#allocation2] sm:$0xff] %vm690, %v522
        %700 = vst.msk [vmem:[#allocation2 + $0x8] sm:$0xff] %vm690, %v523
        %701 = vst.msk [vmem:[#allocation2 + $0x10] sm:$0xff] %vm690, %v524
        %702 = vst.msk [vmem:[#allocation2 + $0x18] sm:$0xff] %vm690, %v525
        %703 = vst.msk [vmem:[#allocation2 + $0x20] sm:$0xff] %vm690, %v526
        %704 = vst.msk [vmem:[#allocation2 + $0x28] sm:$0xff] %vm690, %v527
        %705 = vst.msk [vmem:[#allocation2 + $0x30] sm:$0xff] %vm690, %v528
        %706 = vst.msk [vmem:[#allocation2 + $0x38] sm:$0xff] %vm690, %v529
      $region40: #{srn_forward.5} parent=31 // pred_fallthru
        _
      %p707 = scmp.eq.s32.totalorder %s20, 1
      // Predicated region
      $region41: #{srn_forward.5} parent=31 // pred_check
        %p708 = pneg %p707
      $region42: #{srn_forward.5} parent=31 // pred_check_branch
        %710 = sbr.rel (%p708) target = $region44
      $region43: #{srn_forward.5} parent=31 // pred_region
        %s711 = smul.u32 %s21, 16
        %s712 = smul.addr %s711, 8
        %s713 = scalar_lea.vmem [#allocation4], %s712
        %v714 = vld [vmem:[%s713] sm:$0xff]
        %v715 = vld [vmem:[%s713 + $0x8] sm:$0xff]
        %v716 = vld [vmem:[%s713 + $0x10] sm:$0xff]
        %v717 = vld [vmem:[%s713 + $0x18] sm:$0xff]
        %v718 = vld [vmem:[%s713 + $0x20] sm:$0xff]
        %v719 = vld [vmem:[%s713 + $0x28] sm:$0xff]
        %v720 = vld [vmem:[%s713 + $0x30] sm:$0xff]
        %v721 = vld [vmem:[%s713 + $0x38] sm:$0xff]
        %v722 = vld [vmem:[%s713 + $0x40] sm:$0xff]
        %v723 = vld [vmem:[%s713 + $0x48] sm:$0xff]
        %v724 = vld [vmem:[%s713 + $0x50] sm:$0xff]
        %v725 = vld [vmem:[%s713 + $0x58] sm:$0xff]
        %v726 = vld [vmem:[%s713 + $0x60] sm:$0xff]
        %v727 = vld [vmem:[%s713 + $0x68] sm:$0xff]
        %v728 = vld [vmem:[%s713 + $0x70] sm:$0xff]
        %v729 = vld [vmem:[%s713 + $0x78] sm:$0xff]
        %v730 = vld [vmem:[#allocation2] sm:$0xff]
        %v731 = vld [vmem:[#allocation2 + $0x8] sm:$0xff]
        %v732 = vld [vmem:[#allocation2 + $0x10] sm:$0xff]
        %v733 = vld [vmem:[#allocation2 + $0x18] sm:$0xff]
        %v734 = vld [vmem:[#allocation2 + $0x20] sm:$0xff]
        %v735 = vld [vmem:[#allocation2 + $0x28] sm:$0xff]
        %v736 = vld [vmem:[#allocation2 + $0x30] sm:$0xff]
        %v737 = vld [vmem:[#allocation2 + $0x38] sm:$0xff]
        %739 = vset.pattern.permute.xlu0 0
        %740 = vperm.xlu0 %739, %v730
        %v741 = vpop.permute.xlu0 %740
        %744 = vset.pattern.permute.xlu0 0
        %745 = vperm.xlu0 %744, %v731
        %v746 = vpop.permute.xlu0 %745
        %749 = vset.pattern.permute.xlu0 0
        %750 = vperm.xlu0 %749, %v732
        %v751 = vpop.permute.xlu0 %750
        %754 = vset.pattern.permute.xlu0 0
        %755 = vperm.xlu0 %754, %v733
        %v756 = vpop.permute.xlu0 %755
        %759 = vset.pattern.permute.xlu0 0
        %760 = vperm.xlu0 %759, %v734
        %v761 = vpop.permute.xlu0 %760
        %764 = vset.pattern.permute.xlu0 0
        %765 = vperm.xlu0 %764, %v735
        %v766 = vpop.permute.xlu0 %765
        %769 = vset.pattern.permute.xlu0 0
        %770 = vperm.xlu0 %769, %v736
        %v771 = vpop.permute.xlu0 %770
        %774 = vset.pattern.permute.xlu0 0
        %775 = vperm.xlu0 %774, %v737
        %v776 = vpop.permute.xlu0 %775
        %v778 = vsub.f32 %v714, %v741
        %v779 = vsub.f32 %v715, %v741
        %v780 = vsub.f32 %v716, %v746
        %v781 = vsub.f32 %v717, %v746
        %v782 = vsub.f32 %v718, %v751
        %v783 = vsub.f32 %v719, %v751
        %v784 = vsub.f32 %v720, %v756
        %v785 = vsub.f32 %v721, %v756
        %v786 = vsub.f32 %v722, %v761
        %v787 = vsub.f32 %v723, %v761
        %v788 = vsub.f32 %v724, %v766
        %v789 = vsub.f32 %v725, %v766
        %v790 = vsub.f32 %v726, %v771
        %v791 = vsub.f32 %v727, %v771
        %v792 = vsub.f32 %v728, %v776
        %v793 = vsub.f32 %v729, %v776
        %v794 = vld [vmem:[#allocation3] sm:$0xff]
        %v795 = vld [vmem:[#allocation3 + $0x8] sm:$0xff]
        %v796 = vld [vmem:[#allocation3 + $0x10] sm:$0xff]
        %v797 = vld [vmem:[#allocation3 + $0x18] sm:$0xff]
        %v798 = vld [vmem:[#allocation3 + $0x20] sm:$0xff]
        %v799 = vld [vmem:[#allocation3 + $0x28] sm:$0xff]
        %v800 = vld [vmem:[#allocation3 + $0x30] sm:$0xff]
        %v801 = vld [vmem:[#allocation3 + $0x38] sm:$0xff]
        %v802 = vlog2.pop %v794
        %v803 = vmul.f32 %v802, 0.6931472
        %v804 = vlog2.pop %v795
        %v805 = vmul.f32 %v804, 0.6931472
        %v806 = vlog2.pop %v796
        %v807 = vmul.f32 %v806, 0.6931472
        %v808 = vlog2.pop %v797
        %v809 = vmul.f32 %v808, 0.6931472
        %v810 = vlog2.pop %v798
        %v811 = vmul.f32 %v810, 0.6931472
        %v812 = vlog2.pop %v799
        %v813 = vmul.f32 %v812, 0.6931472
        %v814 = vlog2.pop %v800
        %v815 = vmul.f32 %v814, 0.6931472
        %v816 = vlog2.pop %v801
        %v817 = vmul.f32 %v816, 0.6931472
        %819 = vset.pattern.permute.xlu0 0
        %820 = vperm.xlu0 %819, %v803
        %v821 = vpop.permute.xlu0 %820
        %824 = vset.pattern.permute.xlu0 0
        %825 = vperm.xlu0 %824, %v805
        %v826 = vpop.permute.xlu0 %825
        %829 = vset.pattern.permute.xlu0 0
        %830 = vperm.xlu0 %829, %v807
        %v831 = vpop.permute.xlu0 %830
        %834 = vset.pattern.permute.xlu0 0
        %835 = vperm.xlu0 %834, %v809
        %v836 = vpop.permute.xlu0 %835
        %839 = vset.pattern.permute.xlu0 0
        %840 = vperm.xlu0 %839, %v811
        %v841 = vpop.permute.xlu0 %840
        %844 = vset.pattern.permute.xlu0 0
        %845 = vperm.xlu0 %844, %v813
        %v846 = vpop.permute.xlu0 %845
        %849 = vset.pattern.permute.xlu0 0
        %850 = vperm.xlu0 %849, %v815
        %v851 = vpop.permute.xlu0 %850
        %854 = vset.pattern.permute.xlu0 0
        %855 = vperm.xlu0 %854, %v817
        %v856 = vpop.permute.xlu0 %855
        %v858 = vsub.f32 %v778, %v821
        %v859 = vsub.f32 %v779, %v821
        %v860 = vsub.f32 %v780, %v826
        %v861 = vsub.f32 %v781, %v826
        %v862 = vsub.f32 %v782, %v831
        %v863 = vsub.f32 %v783, %v831
        %v864 = vsub.f32 %v784, %v836
        %v865 = vsub.f32 %v785, %v836
        %v866 = vsub.f32 %v786, %v841
        %v867 = vsub.f32 %v787, %v841
        %v868 = vsub.f32 %v788, %v846
        %v869 = vsub.f32 %v789, %v846
        %v870 = vsub.f32 %v790, %v851
        %v871 = vsub.f32 %v791, %v851
        %v872 = vsub.f32 %v792, %v856
        %v873 = vsub.f32 %v793, %v856
        %874 = vst [vmem:[%s276] sm:$0xff] %v858
        %875 = vst [vmem:[%s276 + $0x8] sm:$0xff] %v859
        %876 = vst [vmem:[%s276 + $0x10] sm:$0xff] %v860
        %877 = vst [vmem:[%s276 + $0x18] sm:$0xff] %v861
        %878 = vst [vmem:[%s276 + $0x20] sm:$0xff] %v862
        %879 = vst [vmem:[%s276 + $0x28] sm:$0xff] %v863
        %880 = vst [vmem:[%s276 + $0x30] sm:$0xff] %v864
        %881 = vst [vmem:[%s276 + $0x38] sm:$0xff] %v865
        %882 = vst [vmem:[%s276 + $0x40] sm:$0xff] %v866
        %883 = vst [vmem:[%s276 + $0x48] sm:$0xff] %v867
        %884 = vst [vmem:[%s276 + $0x50] sm:$0xff] %v868
        %885 = vst [vmem:[%s276 + $0x58] sm:$0xff] %v869
        %886 = vst [vmem:[%s276 + $0x60] sm:$0xff] %v870
        %887 = vst [vmem:[%s276 + $0x68] sm:$0xff] %v871
        %888 = vst [vmem:[%s276 + $0x70] sm:$0xff] %v872
        %889 = vst [vmem:[%s276 + $0x78] sm:$0xff] %v873
      $region44: #{srn_forward.5} parent=31 // pred_fallthru
        _
      %s890 = smul.u32 %s21, %s20
      %s891 = smul.u32 8, %s19
      %s892 = smul.u32 2, %s890
      %p893 = scmp.lt.s32.totalorder %s891, 7
      %s894 = scalar_select %p893, %s891, 7
      %p895 = scmp.lt.s32.totalorder %s892, 1
      %s896 = scalar_select %p895, %s892, 1
      %s897 = smul.addr %s894, 2
      %s898 = sadd.s32 %s896, %s897
      %s899 = smul.addr %s898, 8
      %s900 = scalar_lea.vmem %s3, %s899
      // Predicated region
      $region45: #{srn_forward.5} parent=31 // pred_check
        %p901 = pneg %p141
      $region46: #{srn_forward.5} parent=31 // pred_check_branch
        %903 = sbr.rel (%p901) target = $region48
      $region47: #{srn_forward.5} parent=31 // pred_region
        %s904 = smul.u32 %s21, %s20
        %s905 = smul.u32 8, %s19
        %s906 = smul.u32 2, %s904
      $region48: #{srn_forward.5} parent=31 // pred_fallthru
        _
    $region32: #{srn_forward.5} parent=5 // pred_fallthru
      _
    %p907 = scmp.le.s32.totalorder 2, %s9
    // Predicated region
    $region49: #{srn_forward.5} parent=5 // pred_check
      %p908 = pneg %p907
    $region50: #{srn_forward.5} parent=5 // pred_check_branch
      %910 = sbr.rel (%p908) target = $region52
    $region51: #{srn_forward.5} parent=5 // pred_region
      %s911 = ssub.s32 %s9, 2
      // Predicated region
      $region53: #{srn_forward.5} parent=51 // pred_check
        %p912 = pneg %p147
      $region54: #{srn_forward.5} parent=51 // pred_check_branch
        %914 = sbr.rel (%p912) target = $region56
      $region55: #{srn_forward.5} parent=51 // pred_region
        %s915 = smul.u32 %s24, %s23
        %s916 = smul.u32 8, %s22
        %s917 = smul.u32 2, %s915
        %p918 = scmp.lt.s32.totalorder %s916, 7
        %s919 = scalar_select %p918, %s916, 7
        %p920 = scmp.lt.s32.totalorder %s917, 1
        %s921 = scalar_select %p920, %s917, 1
        %s922 = smul.addr %s919, 2
        %s923 = sadd.s32 %s921, %s922
        %s924 = smul.addr %s923, 8
        %s925 = scalar_lea.vmem %s3, %s924
      $region56: #{srn_forward.5} parent=51 // pred_fallthru
        _
    $region52: #{srn_forward.5} parent=5 // pred_fallthru
      _
  $region6: #{srn_forward.5} parent=0 // loop_footer
    %s13 = sadd.s32 1, %s9
  $region7: #{srn_forward.5} parent=0 // loop_footer_branch
    %8 = sbr.rel target = $region3
  $region8: #{srn_forward.5} parent=0 // loop_exit
    _

// kernel: srn_forward.3
$region0: #{srn_forward.3}
  #allocation0 [shape = 'u32[]', space=smem, size = 0x4, offset = 0x4, fixed_abs, tag = 'smem constant byte address 0x4 - core index']
  #allocation1 [shape = 'u32[144,128]{1,0:T(1,128)}', space=vmem, size = 0x12000, scoped, tag = 'internal scratch']
  #allocation2 [shape = 'f32[8,8,128]{2,1,0:T(8,128)}', space=vmem, size = 0x8000, scoped, tag = 'scratch operand']
  #allocation3 [shape = 'f32[8,128]{1,0:T(8,128)}', space=vmem, size = 0x1000, scoped, tag = 'scratch operand']
  %s0 = inlined_call_operand.vmem [shape: f32[8,8,128], index: 0, kind: input, shape index: {}]
  %s1 = inlined_call_operand.vmem [shape: f32[128,128], index: 1, kind: input, shape index: {}]
  %s2 = inlined_call_operand.vmem [shape: f32[1,128], index: 2, kind: input, shape index: {}]
  %s3 = inlined_call_operand.vmem [shape: f32[128,128], index: 3, kind: input, shape index: {}]
  %s4 = inlined_call_operand.vmem [shape: f32[8,128], index: 4, kind: input, shape index: {}]
  %s5 = inlined_call_operand.vmem [shape: f32[8,8,128], index: 5, kind: output, shape index: {0}]
  %s6 = inlined_call_operand.vmem [shape: f32[8,128], index: 6, kind: output, shape index: {1}]
  %7 = xla_tuple %s5, %s6
  %s8 = sld [smem:[#allocation0]]
  $region46: #{srn_forward.3} parent=0
    _
  %s10 = ssub.s32 1, %s8
  %s11 = scalar_select 0, %s10, %s8
  // Predicated region
  $region2: #{srn_forward.3} parent=0 // pred_check
    _
  $region3: #{srn_forward.3} parent=0 // pred_check_branch
    %13 = sbr.rel (0) target = $region5
  $region4: #{srn_forward.3} parent=0 // pred_region
    _
  $region5: #{srn_forward.3} parent=0 // pred_fallthru
    _
  // Predicated region
  $region6: #{srn_forward.3} parent=0 // pred_check
    _
  $region7: #{srn_forward.3} parent=0 // pred_check_branch
    %15 = sbr.rel (0) target = $region9
  $region8: #{srn_forward.3} parent=0 // pred_region
    _
  $region9: #{srn_forward.3} parent=0 // pred_fallthru
    _
  // Predicated region
  $region10: #{srn_forward.3} parent=0 // pred_check
    _
  $region11: #{srn_forward.3} parent=0 // pred_check_branch
    %17 = sbr.rel (0) target = $region13
  $region12: #{srn_forward.3} parent=0 // pred_region
    _
  $region13: #{srn_forward.3} parent=0 // pred_fallthru
    _
  // Predicated region
  $region14: #{srn_forward.3} parent=0 // pred_check
    _
  $region15: #{srn_forward.3} parent=0 // pred_check_branch
    %19 = sbr.rel (0) target = $region17
  $region16: #{srn_forward.3} parent=0 // pred_region
    _
  $region17: #{srn_forward.3} parent=0 // pred_fallthru
    _
  // Predicated region
  $region18: #{srn_forward.3} parent=0 // pred_check
    _
  $region19: #{srn_forward.3} parent=0 // pred_check_branch
    %21 = sbr.rel (0) target = $region21
  $region20: #{srn_forward.3} parent=0 // pred_region
    _
  $region21: #{srn_forward.3} parent=0 // pred_fallthru
    _
  %v22 = vld [vmem:[%s0] sm:$0xff]
  %v23 = vld [vmem:[%s0 + $0x8] sm:$0xff]
  %v24 = vld [vmem:[%s0 + $0x10] sm:$0xff]
  %v25 = vld [vmem:[%s0 + $0x18] sm:$0xff]
  %v26 = vld [vmem:[%s0 + $0x20] sm:$0xff]
  %v27 = vld [vmem:[%s0 + $0x28] sm:$0xff]
  %v28 = vld [vmem:[%s0 + $0x30] sm:$0xff]
  %v29 = vld [vmem:[%s0 + $0x38] sm:$0xff]
  %v30 = vld [vmem:[%s1] sm:$0xff]
  %v31 = vld [vmem:[%s1 + $0x8] sm:$0xff]
  %v32 = vld [vmem:[%s1 + $0x10] sm:$0xff]
  %v33 = vld [vmem:[%s1 + $0x18] sm:$0xff]
  %v34 = vld [vmem:[%s1 + $0x20] sm:$0xff]
  %v35 = vld [vmem:[%s1 + $0x28] sm:$0xff]
  %v36 = vld [vmem:[%s1 + $0x30] sm:$0xff]
  %v37 = vld [vmem:[%s1 + $0x38] sm:$0xff]
  %v38 = vld [vmem:[%s1 + $0x40] sm:$0xff]
  %v39 = vld [vmem:[%s1 + $0x48] sm:$0xff]
  %v40 = vld [vmem:[%s1 + $0x50] sm:$0xff]
  %v41 = vld [vmem:[%s1 + $0x58] sm:$0xff]
  %v42 = vld [vmem:[%s1 + $0x60] sm:$0xff]
  %v43 = vld [vmem:[%s1 + $0x68] sm:$0xff]
  %v44 = vld [vmem:[%s1 + $0x70] sm:$0xff]
  %v45 = vld [vmem:[%s1 + $0x78] sm:$0xff]
  %v46 = vld [vmem:[%s2] sm:$0x1]
  %v48 = vlaneseq
  %v49 = vshrl.u32 %v48, 7
  %v50 = vsub.s32 0, %v49
  %v51 = vrot.slane %v46, %v50
  %53 = vmatprep.subr.mxu0 0.0
  %54 = vmatpush1.msra.mxu0 %v45
  %55 = vmatprep.subr.mxu0 0.0
  %56 = vmatpush1.msra.mxu0 %v44
  %57 = vmatprep.subr.mxu0 0.0
  %58 = vmatpush1.msra.mxu0 %v43
  %59 = vmatprep.subr.mxu0 0.0
  %60 = vmatpush1.msra.mxu0 %v42
  %61 = vmatprep.subr.mxu0 0.0
  %62 = vmatpush1.msra.mxu0 %v41
  %63 = vmatprep.subr.mxu0 0.0
  %64 = vmatpush1.msra.mxu0 %v40
  %65 = vmatprep.subr.mxu0 0.0
  %66 = vmatpush1.msra.mxu0 %v39
  %67 = vmatprep.subr.mxu0 0.0
  %68 = vmatpush1.msra.mxu0 %v38
  %69 = vmatprep.subr.mxu0 0.0
  %70 = vmatpush1.msra.mxu0 %v37
  %71 = vmatprep.subr.mxu0 0.0
  %72 = vmatpush1.msra.mxu0 %v36
  %73 = vmatprep.subr.mxu0 0.0
  %74 = vmatpush1.msra.mxu0 %v35
  %75 = vmatprep.subr.mxu0 0.0
  %76 = vmatpush1.msra.mxu0 %v34
  %77 = vmatprep.subr.mxu0 0.0
  %78 = vmatpush1.msra.mxu0 %v33
  %79 = vmatprep.subr.mxu0 0.0
  %80 = vmatpush1.msra.mxu0 %v32
  %81 = vmatprep.subr.mxu0 0.0
  %82 = vmatpush1.msra.mxu0 %v31
  %83 = vmatprep.subr.mxu0 0.0
  %84 = vmatpush1.msra.mxu0 %v30
  %85 = vmatprep.subr.mxu0 0.0
  %86 = vmatpush2.msra.mxu0 0.0
  %87 = vmatprep.subr.mxu0 0.0
  %88 = vmatpush2.msra.mxu0 0.0
  %89 = vmatprep.subr.mxu0 0.0
  %90 = vmatpush2.msra.mxu0 0.0
  %91 = vmatprep.subr.mxu0 0.0
  %92 = vmatpush2.msra.mxu0 0.0
  %93 = vmatprep.subr.mxu0 0.0
  %94 = vmatpush2.msra.mxu0 0.0
  %95 = vmatprep.subr.mxu0 0.0
  %96 = vmatpush2.msra.mxu0 0.0
  %97 = vmatprep.subr.mxu0 0.0
  %98 = vmatpush2.msra.mxu0 0.0
  %99 = vmatprep.subr.mxu0 0.0
  %100 = vmatpush2.msra.mxu0 0.0
  %101 = vmatprep.subr.mxu0 0.0
  %102 = vmatpush2.msra.mxu0 0.0
  %103 = vmatprep.subr.mxu0 0.0
  %104 = vmatpush2.msra.mxu0 0.0
  %105 = vmatprep.subr.mxu0 0.0
  %106 = vmatpush2.msra.mxu0 0.0
  %107 = vmatprep.subr.mxu0 0.0
  %108 = vmatpush2.msra.mxu0 0.0
  %109 = vmatprep.subr.mxu0 0.0
  %110 = vmatpush2.msra.mxu0 0.0
  %111 = vmatprep.subr.mxu0 0.0
  %112 = vmatpush2.msra.mxu0 0.0
  %113 = vmatprep.subr.mxu0 0.0
  %114 = vmatpush2.msra.mxu0 0.0
  %115 = vmatprep.subr.mxu0 0.0
  %116 = vmatpush2.msra.mxu0 0.0
  %117 = vmatprep.mubr.f32.mxu0 0.0
  %118 = vmatmul.mubr.f32.gmra.mxu0 %v22
  %v119 = vpop.f32.mrf.mxu0
  %v120 = vadd.f32 %v51, %v119
  %v121 = vpop.f32.mrf.mxu0
  %122 = vmatprep.mubr.f32.mxu0 0.0
  %123 = vmatmul.mubr.f32.gmra.mxu0 %v23
  %v124 = vpop.f32.mrf.mxu0
  %v125 = vadd.f32 %v51, %v124
  %v126 = vpop.f32.mrf.mxu0
  %127 = vmatprep.mubr.f32.mxu0 0.0
  %128 = vmatmul.mubr.f32.gmra.mxu0 %v24
  %v129 = vpop.f32.mrf.mxu0
  %v130 = vadd.f32 %v51, %v129
  %v131 = vpop.f32.mrf.mxu0
  %132 = vmatprep.mubr.f32.mxu0 0.0
  %133 = vmatmul.mubr.f32.gmra.mxu0 %v25
  %v134 = vpop.f32.mrf.mxu0
  %v135 = vadd.f32 %v51, %v134
  %v136 = vpop.f32.mrf.mxu0
  %137 = vmatprep.mubr.f32.mxu0 0.0
  %138 = vmatmul.mubr.f32.gmra.mxu0 %v26
  %v139 = vpop.f32.mrf.mxu0
  %v140 = vadd.f32 %v51, %v139
  %v141 = vpop.f32.mrf.mxu0
  %142 = vmatprep.mubr.f32.mxu0 0.0
  %143 = vmatmul.mubr.f32.gmra.mxu0 %v27
  %v144 = vpop.f32.mrf.mxu0
  %v145 = vadd.f32 %v51, %v144
  %v146 = vpop.f32.mrf.mxu0
  %147 = vmatprep.mubr.f32.mxu0 0.0
  %148 = vmatmul.mubr.f32.gmra.mxu0 %v28
  %v149 = vpop.f32.mrf.mxu0
  %v150 = vadd.f32 %v51, %v149
  %v151 = vpop.f32.mrf.mxu0
  %152 = vmatprep.mubr.f32.mxu0 0.0
  %153 = vmatmul.mubr.f32.gmra.mxu0 %v29
  %v154 = vpop.f32.mrf.mxu0
  %v155 = vadd.f32 %v51, %v154
  %v156 = vpop.f32.mrf.mxu0
  %157 = vdwg.mxu0
  %158 = vst [vmem:[#allocation2] sm:$0xff] %v120
  %159 = vst [vmem:[#allocation2 + $0x8] sm:$0xff] %v125
  %160 = vst [vmem:[#allocation2 + $0x10] sm:$0xff] %v130
  %161 = vst [vmem:[#allocation2 + $0x18] sm:$0xff] %v135
  %162 = vst [vmem:[#allocation2 + $0x20] sm:$0xff] %v140
  %163 = vst [vmem:[#allocation2 + $0x28] sm:$0xff] %v145
  %164 = vst [vmem:[#allocation2 + $0x30] sm:$0xff] %v150
  %165 = vst [vmem:[#allocation2 + $0x38] sm:$0xff] %v155
  %p166 = scmp.eq.s32.totalorder 0, 0
  // Predicated region
  $region22: #{srn_forward.3} parent=0 // pred_check
    %p167 = pneg %p166
  $region23: #{srn_forward.3} parent=0 // pred_check_branch
    %169 = sbr.rel (%p167) target = $region25
  $region24: #{srn_forward.3} parent=0 // pred_region
    %v170 = vld [vmem:[%s4] sm:$0xff]
    %171 = vst [vmem:[#allocation3] sm:$0xff] %v170
  $region25: #{srn_forward.3} parent=0 // pred_fallthru
    _
  %v172 = vld [vmem:[#allocation3] sm:$0xff]
  %v173 = vld [vmem:[#allocation2] sm:$0xff]
  %v174 = vld [vmem:[%s3] sm:$0xff]
  %v175 = vld [vmem:[%s3 + $0x8] sm:$0xff]
  %v176 = vld [vmem:[%s3 + $0x10] sm:$0xff]
  %v177 = vld [vmem:[%s3 + $0x18] sm:$0xff]
  %v178 = vld [vmem:[%s3 + $0x20] sm:$0xff]
  %v179 = vld [vmem:[%s3 + $0x28] sm:$0xff]
  %v180 = vld [vmem:[%s3 + $0x30] sm:$0xff]
  %v181 = vld [vmem:[%s3 + $0x38] sm:$0xff]
  %v182 = vld [vmem:[%s3 + $0x40] sm:$0xff]
  %v183 = vld [vmem:[%s3 + $0x48] sm:$0xff]
  %v184 = vld [vmem:[%s3 + $0x50] sm:$0xff]
  %v185 = vld [vmem:[%s3 + $0x58] sm:$0xff]
  %v186 = vld [vmem:[%s3 + $0x60] sm:$0xff]
  %v187 = vld [vmem:[%s3 + $0x68] sm:$0xff]
  %v188 = vld [vmem:[%s3 + $0x70] sm:$0xff]
  %v189 = vld [vmem:[%s3 + $0x78] sm:$0xff]
  %190 = vmatprep.subr.mxu0 0.0
  %191 = vmatpush1.msra.mxu0 %v189
  %192 = vmatprep.subr.mxu0 0.0
  %193 = vmatpush1.msra.mxu0 %v188
  %194 = vmatprep.subr.mxu0 0.0
  %195 = vmatpush1.msra.mxu0 %v187
  %196 = vmatprep.subr.mxu0 0.0
  %197 = vmatpush1.msra.mxu0 %v186
  %198 = vmatprep.subr.mxu0 0.0
  %199 = vmatpush1.msra.mxu0 %v185
  %200 = vmatprep.subr.mxu0 0.0
  %201 = vmatpush1.msra.mxu0 %v184
  %202 = vmatprep.subr.mxu0 0.0
  %203 = vmatpush1.msra.mxu0 %v183
  %204 = vmatprep.subr.mxu0 0.0
  %205 = vmatpush1.msra.mxu0 %v182
  %206 = vmatprep.subr.mxu0 0.0
  %207 = vmatpush1.msra.mxu0 %v181
  %208 = vmatprep.subr.mxu0 0.0
  %209 = vmatpush1.msra.mxu0 %v180
  %210 = vmatprep.subr.mxu0 0.0
  %211 = vmatpush1.msra.mxu0 %v179
  %212 = vmatprep.subr.mxu0 0.0
  %213 = vmatpush1.msra.mxu0 %v178
  %214 = vmatprep.subr.mxu0 0.0
  %215 = vmatpush1.msra.mxu0 %v177
  %216 = vmatprep.subr.mxu0 0.0
  %217 = vmatpush1.msra.mxu0 %v176
  %218 = vmatprep.subr.mxu0 0.0
  %219 = vmatpush1.msra.mxu0 %v175
  %220 = vmatprep.subr.mxu0 0.0
  %221 = vmatpush1.msra.mxu0 %v174
  %222 = vmatprep.subr.mxu0 0.0
  %223 = vmatpush2.msra.mxu0 0.0
  %224 = vmatprep.subr.mxu0 0.0
  %225 = vmatpush2.msra.mxu0 0.0
  %226 = vmatprep.subr.mxu0 0.0
  %227 = vmatpush2.msra.mxu0 0.0
  %228 = vmatprep.subr.mxu0 0.0
  %229 = vmatpush2.msra.mxu0 0.0
  %230 = vmatprep.subr.mxu0 0.0
  %231 = vmatpush2.msra.mxu0 0.0
  %232 = vmatprep.subr.mxu0 0.0
  %233 = vmatpush2.msra.mxu0 0.0
  %234 = vmatprep.subr.mxu0 0.0
  %235 = vmatpush2.msra.mxu0 0.0
  %236 = vmatprep.subr.mxu0 0.0
  %237 = vmatpush2.msra.mxu0 0.0
  %238 = vmatprep.subr.mxu0 0.0
  %239 = vmatpush2.msra.mxu0 0.0
  %240 = vmatprep.subr.mxu0 0.0
  %241 = vmatpush2.msra.mxu0 0.0
  %242 = vmatprep.subr.mxu0 0.0
  %243 = vmatpush2.msra.mxu0 0.0
  %244 = vmatprep.subr.mxu0 0.0
  %245 = vmatpush2.msra.mxu0 0.0
  %246 = vmatprep.subr.mxu0 0.0
  %247 = vmatpush2.msra.mxu0 0.0
  %248 = vmatprep.subr.mxu0 0.0
  %249 = vmatpush2.msra.mxu0 0.0
  %250 = vmatprep.subr.mxu0 0.0
  %251 = vmatpush2.msra.mxu0 0.0
  %252 = vmatprep.subr.mxu0 0.0
  %253 = vmatpush2.msra.mxu0 0.0
  %254 = vmatprep.mubr.f32.mxu0 0.0
  %255 = vmatmul.mubr.f32.gmra.mxu0 %v172
  %v256 = vpop.f32.mrf.mxu0
  %v257 = vadd.f32 0.0, %v256
  %v258 = vpop.f32.mrf.mxu0
  %259 = vdwg.mxu0
  %v260 = vadd.f32 %v173, %v257
  %v261 = vtanh.pop %v260
  %262 = vst [vmem:[%s5] sm:$0xff] %v261
  %s263 = scalar_lea.vmem [#allocation2], 8
  %v264 = vld [vmem:[%s263] sm:$0xff]
  %v265 = vld [vmem:[%s3] sm:$0xff]
  %v266 = vld [vmem:[%s3 + $0x8] sm:$0xff]
  %v267 = vld [vmem:[%s3 + $0x10] sm:$0xff]
  %v268 = vld [vmem:[%s3 + $0x18] sm:$0xff]
  %v269 = vld [vmem:[%s3 + $0x20] sm:$0xff]
  %v270 = vld [vmem:[%s3 + $0x28] sm:$0xff]
  %v271 = vld [vmem:[%s3 + $0x30] sm:$0xff]
  %v272 = vld [vmem:[%s3 + $0x38] sm:$0xff]
  %v273 = vld [vmem:[%s3 + $0x40] sm:$0xff]
  %v274 = vld [vmem:[%s3 + $0x48] sm:$0xff]
  %v275 = vld [vmem:[%s3 + $0x50] sm:$0xff]
  %v276 = vld [vmem:[%s3 + $0x58] sm:$0xff]
  %v277 = vld [vmem:[%s3 + $0x60] sm:$0xff]
  %v278 = vld [vmem:[%s3 + $0x68] sm:$0xff]
  %v279 = vld [vmem:[%s3 + $0x70] sm:$0xff]
  %v280 = vld [vmem:[%s3 + $0x78] sm:$0xff]
  %281 = vmatprep.subr.mxu0 0.0
  %282 = vmatpush1.msra.mxu0 %v280
  %283 = vmatprep.subr.mxu0 0.0
  %284 = vmatpush1.msra.mxu0 %v279
  %285 = vmatprep.subr.mxu0 0.0
  %286 = vmatpush1.msra.mxu0 %v278
  %287 = vmatprep.subr.mxu0 0.0
  %288 = vmatpush1.msra.mxu0 %v277
  %289 = vmatprep.subr.mxu0 0.0
  %290 = vmatpush1.msra.mxu0 %v276
  %291 = vmatprep.subr.mxu0 0.0
  %292 = vmatpush1.msra.mxu0 %v275
  %293 = vmatprep.subr.mxu0 0.0
  %294 = vmatpush1.msra.mxu0 %v274
  %295 = vmatprep.subr.mxu0 0.0
  %296 = vmatpush1.msra.mxu0 %v273
  %297 = vmatprep.subr.mxu0 0.0
  %298 = vmatpush1.msra.mxu0 %v272
  %299 = vmatprep.subr.mxu0 0.0
  %300 = vmatpush1.msra.mxu0 %v271
  %301 = vmatprep.subr.mxu0 0.0
  %302 = vmatpush1.msra.mxu0 %v270
  %303 = vmatprep.subr.mxu0 0.0
  %304 = vmatpush1.msra.mxu0 %v269
  %305 = vmatprep.subr.mxu0 0.0
  %306 = vmatpush1.msra.mxu0 %v268
  %307 = vmatprep.subr.mxu0 0.0
  %308 = vmatpush1.msra.mxu0 %v267
  %309 = vmatprep.subr.mxu0 0.0
  %310 = vmatpush1.msra.mxu0 %v266
  %311 = vmatprep.subr.mxu0 0.0
  %312 = vmatpush1.msra.mxu0 %v265
  %313 = vmatprep.subr.mxu0 0.0
  %314 = vmatpush2.msra.mxu0 0.0
  %315 = vmatprep.subr.mxu0 0.0
  %316 = vmatpush2.msra.mxu0 0.0
  %317 = vmatprep.subr.mxu0 0.0
  %318 = vmatpush2.msra.mxu0 0.0
  %319 = vmatprep.subr.mxu0 0.0
  %320 = vmatpush2.msra.mxu0 0.0
  %321 = vmatprep.subr.mxu0 0.0
  %322 = vmatpush2.msra.mxu0 0.0
  %323 = vmatprep.subr.mxu0 0.0
  %324 = vmatpush2.msra.mxu0 0.0
  %325 = vmatprep.subr.mxu0 0.0
  %326 = vmatpush2.msra.mxu0 0.0
  %327 = vmatprep.subr.mxu0 0.0
  %328 = vmatpush2.msra.mxu0 0.0
  %329 = vmatprep.subr.mxu0 0.0
  %330 = vmatpush2.msra.mxu0 0.0
  %331 = vmatprep.subr.mxu0 0.0
  %332 = vmatpush2.msra.mxu0 0.0
  %333 = vmatprep.subr.mxu0 0.0
  %334 = vmatpush2.msra.mxu0 0.0
  %335 = vmatprep.subr.mxu0 0.0
  %336 = vmatpush2.msra.mxu0 0.0
  %337 = vmatprep.subr.mxu0 0.0
  %338 = vmatpush2.msra.mxu0 0.0
  %339 = vmatprep.subr.mxu0 0.0
  %340 = vmatpush2.msra.mxu0 0.0
  %341 = vmatprep.subr.mxu0 0.0
  %342 = vmatpush2.msra.mxu0 0.0
  %343 = vmatprep.subr.mxu0 0.0
  %344 = vmatpush2.msra.mxu0 0.0
  %345 = vmatprep.mubr.f32.mxu0 0.0
  %346 = vmatmul.mubr.f32.gmra.mxu0 %v261
  %v347 = vpop.f32.mrf.mxu0
  %v348 = vadd.f32 0.0, %v347
  %v349 = vpop.f32.mrf.mxu0
  %350 = vdwg.mxu0
  %v351 = vadd.f32 %v264, %v348
  %v352 = vtanh.pop %v351
  %s353 = scalar_lea.vmem %s5, 8
  %354 = vst [vmem:[%s353] sm:$0xff] %v352
  %s355 = scalar_lea.vmem [#allocation2], 16
  %v356 = vld [vmem:[%s355] sm:$0xff]
  %v357 = vld [vmem:[%s3] sm:$0xff]
  %v358 = vld [vmem:[%s3 + $0x8] sm:$0xff]
  %v359 = vld [vmem:[%s3 + $0x10] sm:$0xff]
  %v360 = vld [vmem:[%s3 + $0x18] sm:$0xff]
  %v361 = vld [vmem:[%s3 + $0x20] sm:$0xff]
  %v362 = vld [vmem:[%s3 + $0x28] sm:$0xff]
  %v363 = vld [vmem:[%s3 + $0x30] sm:$0xff]
  %v364 = vld [vmem:[%s3 + $0x38] sm:$0xff]
  %v365 = vld [vmem:[%s3 + $0x40] sm:$0xff]
  %v366 = vld [vmem:[%s3 + $0x48] sm:$0xff]
  %v367 = vld [vmem:[%s3 + $0x50] sm:$0xff]
  %v368 = vld [vmem:[%s3 + $0x58] sm:$0xff]
  %v369 = vld [vmem:[%s3 + $0x60] sm:$0xff]
  %v370 = vld [vmem:[%s3 + $0x68] sm:$0xff]
  %v371 = vld [vmem:[%s3 + $0x70] sm:$0xff]
  %v372 = vld [vmem:[%s3 + $0x78] sm:$0xff]
  %373 = vmatprep.subr.mxu0 0.0
  %374 = vmatpush1.msra.mxu0 %v372
  %375 = vmatprep.subr.mxu0 0.0
  %376 = vmatpush1.msra.mxu0 %v371
  %377 = vmatprep.subr.mxu0 0.0
  %378 = vmatpush1.msra.mxu0 %v370
  %379 = vmatprep.subr.mxu0 0.0
  %380 = vmatpush1.msra.mxu0 %v369
  %381 = vmatprep.subr.mxu0 0.0
  %382 = vmatpush1.msra.mxu0 %v368
  %383 = vmatprep.subr.mxu0 0.0
  %384 = vmatpush1.msra.mxu0 %v367
  %385 = vmatprep.subr.mxu0 0.0
  %386 = vmatpush1.msra.mxu0 %v366
  %387 = vmatprep.subr.mxu0 0.0
  %388 = vmatpush1.msra.mxu0 %v365
  %389 = vmatprep.subr.mxu0 0.0
  %390 = vmatpush1.msra.mxu0 %v364
  %391 = vmatprep.subr.mxu0 0.0
  %392 = vmatpush1.msra.mxu0 %v363
  %393 = vmatprep.subr.mxu0 0.0
  %394 = vmatpush1.msra.mxu0 %v362
  %395 = vmatprep.subr.mxu0 0.0
  %396 = vmatpush1.msra.mxu0 %v361
  %397 = vmatprep.subr.mxu0 0.0
  %398 = vmatpush1.msra.mxu0 %v360
  %399 = vmatprep.subr.mxu0 0.0
  %400 = vmatpush1.msra.mxu0 %v359
  %401 = vmatprep.subr.mxu0 0.0
  %402 = vmatpush1.msra.mxu0 %v358
  %403 = vmatprep.subr.mxu0 0.0
  %404 = vmatpush1.msra.mxu0 %v357
  %405 = vmatprep.subr.mxu0 0.0
  %406 = vmatpush2.msra.mxu0 0.0
  %407 = vmatprep.subr.mxu0 0.0
  %408 = vmatpush2.msra.mxu0 0.0
  %409 = vmatprep.subr.mxu0 0.0
  %410 = vmatpush2.msra.mxu0 0.0
  %411 = vmatprep.subr.mxu0 0.0
  %412 = vmatpush2.msra.mxu0 0.0
  %413 = vmatprep.subr.mxu0 0.0
  %414 = vmatpush2.msra.mxu0 0.0
  %415 = vmatprep.subr.mxu0 0.0
  %416 = vmatpush2.msra.mxu0 0.0
  %417 = vmatprep.subr.mxu0 0.0
  %418 = vmatpush2.msra.mxu0 0.0
  %419 = vmatprep.subr.mxu0 0.0
  %420 = vmatpush2.msra.mxu0 0.0
  %421 = vmatprep.subr.mxu0 0.0
  %422 = vmatpush2.msra.mxu0 0.0
  %423 = vmatprep.subr.mxu0 0.0
  %424 = vmatpush2.msra.mxu0 0.0
  %425 = vmatprep.subr.mxu0 0.0
  %426 = vmatpush2.msra.mxu0 0.0
  %427 = vmatprep.subr.mxu0 0.0
  %428 = vmatpush2.msra.mxu0 0.0
  %429 = vmatprep.subr.mxu0 0.0
  %430 = vmatpush2.msra.mxu0 0.0
  %431 = vmatprep.subr.mxu0 0.0
  %432 = vmatpush2.msra.mxu0 0.0
  %433 = vmatprep.subr.mxu0 0.0
  %434 = vmatpush2.msra.mxu0 0.0
  %435 = vmatprep.subr.mxu0 0.0
  %436 = vmatpush2.msra.mxu0 0.0
  %437 = vmatprep.mubr.f32.mxu0 0.0
  %438 = vmatmul.mubr.f32.gmra.mxu0 %v352
  %v439 = vpop.f32.mrf.mxu0
  %v440 = vadd.f32 0.0, %v439
  %v441 = vpop.f32.mrf.mxu0
  %442 = vdwg.mxu0
  %v443 = vadd.f32 %v356, %v440
  %v444 = vtanh.pop %v443
  %s445 = scalar_lea.vmem %s5, 16
  %446 = vst [vmem:[%s445] sm:$0xff] %v444
  %s447 = scalar_lea.vmem [#allocation2], 24
  %v448 = vld [vmem:[%s447] sm:$0xff]
  %v449 = vld [vmem:[%s3] sm:$0xff]
  %v450 = vld [vmem:[%s3 + $0x8] sm:$0xff]
  %v451 = vld [vmem:[%s3 + $0x10] sm:$0xff]
  %v452 = vld [vmem:[%s3 + $0x18] sm:$0xff]
  %v453 = vld [vmem:[%s3 + $0x20] sm:$0xff]
  %v454 = vld [vmem:[%s3 + $0x28] sm:$0xff]
  %v455 = vld [vmem:[%s3 + $0x30] sm:$0xff]
  %v456 = vld [vmem:[%s3 + $0x38] sm:$0xff]
  %v457 = vld [vmem:[%s3 + $0x40] sm:$0xff]
  %v458 = vld [vmem:[%s3 + $0x48] sm:$0xff]
  %v459 = vld [vmem:[%s3 + $0x50] sm:$0xff]
  %v460 = vld [vmem:[%s3 + $0x58] sm:$0xff]
  %v461 = vld [vmem:[%s3 + $0x60] sm:$0xff]
  %v462 = vld [vmem:[%s3 + $0x68] sm:$0xff]
  %v463 = vld [vmem:[%s3 + $0x70] sm:$0xff]
  %v464 = vld [vmem:[%s3 + $0x78] sm:$0xff]
  %465 = vmatprep.subr.mxu0 0.0
  %466 = vmatpush1.msra.mxu0 %v464
  %467 = vmatprep.subr.mxu0 0.0
  %468 = vmatpush1.msra.mxu0 %v463
  %469 = vmatprep.subr.mxu0 0.0
  %470 = vmatpush1.msra.mxu0 %v462
  %471 = vmatprep.subr.mxu0 0.0
  %472 = vmatpush1.msra.mxu0 %v461
  %473 = vmatprep.subr.mxu0 0.0
  %474 = vmatpush1.msra.mxu0 %v460
  %475 = vmatprep.subr.mxu0 0.0
  %476 = vmatpush1.msra.mxu0 %v459
  %477 = vmatprep.subr.mxu0 0.0
  %478 = vmatpush1.msra.mxu0 %v458
  %479 = vmatprep.subr.mxu0 0.0
  %480 = vmatpush1.msra.mxu0 %v457
  %481 = vmatprep.subr.mxu0 0.0
  %482 = vmatpush1.msra.mxu0 %v456
  %483 = vmatprep.subr.mxu0 0.0
  %484 = vmatpush1.msra.mxu0 %v455
  %485 = vmatprep.subr.mxu0 0.0
  %486 = vmatpush1.msra.mxu0 %v454
  %487 = vmatprep.subr.mxu0 0.0
  %488 = vmatpush1.msra.mxu0 %v453
  %489 = vmatprep.subr.mxu0 0.0
  %490 = vmatpush1.msra.mxu0 %v452
  %491 = vmatprep.subr.mxu0 0.0
  %492 = vmatpush1.msra.mxu0 %v451
  %493 = vmatprep.subr.mxu0 0.0
  %494 = vmatpush1.msra.mxu0 %v450
  %495 = vmatprep.subr.mxu0 0.0
  %496 = vmatpush1.msra.mxu0 %v449
  %497 = vmatprep.subr.mxu0 0.0
  %498 = vmatpush2.msra.mxu0 0.0
  %499 = vmatprep.subr.mxu0 0.0
  %500 = vmatpush2.msra.mxu0 0.0
  %501 = vmatprep.subr.mxu0 0.0
  %502 = vmatpush2.msra.mxu0 0.0
  %503 = vmatprep.subr.mxu0 0.0
  %504 = vmatpush2.msra.mxu0 0.0
  %505 = vmatprep.subr.mxu0 0.0
  %506 = vmatpush2.msra.mxu0 0.0
  %507 = vmatprep.subr.mxu0 0.0
  %508 = vmatpush2.msra.mxu0 0.0
  %509 = vmatprep.subr.mxu0 0.0
  %510 = vmatpush2.msra.mxu0 0.0
  %511 = vmatprep.subr.mxu0 0.0
  %512 = vmatpush2.msra.mxu0 0.0
  %513 = vmatprep.subr.mxu0 0.0
  %514 = vmatpush2.msra.mxu0 0.0
  %515 = vmatprep.subr.mxu0 0.0
  %516 = vmatpush2.msra.mxu0 0.0
  %517 = vmatprep.subr.mxu0 0.0
  %518 = vmatpush2.msra.mxu0 0.0
  %519 = vmatprep.subr.mxu0 0.0
  %520 = vmatpush2.msra.mxu0 0.0
  %521 = vmatprep.subr.mxu0 0.0
  %522 = vmatpush2.msra.mxu0 0.0
  %523 = vmatprep.subr.mxu0 0.0
  %524 = vmatpush2.msra.mxu0 0.0
  %525 = vmatprep.subr.mxu0 0.0
  %526 = vmatpush2.msra.mxu0 0.0
  %527 = vmatprep.subr.mxu0 0.0
  %528 = vmatpush2.msra.mxu0 0.0
  %529 = vmatprep.mubr.f32.mxu0 0.0
  %530 = vmatmul.mubr.f32.gmra.mxu0 %v444
  %v531 = vpop.f32.mrf.mxu0
  %v532 = vadd.f32 0.0, %v531
  %v533 = vpop.f32.mrf.mxu0
  %534 = vdwg.mxu0
  %v535 = vadd.f32 %v448, %v532
  %v536 = vtanh.pop %v535
  %s537 = scalar_lea.vmem %s5, 24
  %538 = vst [vmem:[%s537] sm:$0xff] %v536
  %s539 = scalar_lea.vmem [#allocation2], 32
  %v540 = vld [vmem:[%s539] sm:$0xff]
  %v541 = vld [vmem:[%s3] sm:$0xff]
  %v542 = vld [vmem:[%s3 + $0x8] sm:$0xff]
  %v543 = vld [vmem:[%s3 + $0x10] sm:$0xff]
  %v544 = vld [vmem:[%s3 + $0x18] sm:$0xff]
  %v545 = vld [vmem:[%s3 + $0x20] sm:$0xff]
  %v546 = vld [vmem:[%s3 + $0x28] sm:$0xff]
  %v547 = vld [vmem:[%s3 + $0x30] sm:$0xff]
  %v548 = vld [vmem:[%s3 + $0x38] sm:$0xff]
  %v549 = vld [vmem:[%s3 + $0x40] sm:$0xff]
  %v550 = vld [vmem:[%s3 + $0x48] sm:$0xff]
  %v551 = vld [vmem:[%s3 + $0x50] sm:$0xff]
  %v552 = vld [vmem:[%s3 + $0x58] sm:$0xff]
  %v553 = vld [vmem:[%s3 + $0x60] sm:$0xff]
  %v554 = vld [vmem:[%s3 + $0x68] sm:$0xff]
  %v555 = vld [vmem:[%s3 + $0x70] sm:$0xff]
  %v556 = vld [vmem:[%s3 + $0x78] sm:$0xff]
  %557 = vmatprep.subr.mxu0 0.0
  %558 = vmatpush1.msra.mxu0 %v556
  %559 = vmatprep.subr.mxu0 0.0
  %560 = vmatpush1.msra.mxu0 %v555
  %561 = vmatprep.subr.mxu0 0.0
  %562 = vmatpush1.msra.mxu0 %v554
  %563 = vmatprep.subr.mxu0 0.0
  %564 = vmatpush1.msra.mxu0 %v553
  %565 = vmatprep.subr.mxu0 0.0
  %566 = vmatpush1.msra.mxu0 %v552
  %567 = vmatprep.subr.mxu0 0.0
  %568 = vmatpush1.msra.mxu0 %v551
  %569 = vmatprep.subr.mxu0 0.0
  %570 = vmatpush1.msra.mxu0 %v550
  %571 = vmatprep.subr.mxu0 0.0
  %572 = vmatpush1.msra.mxu0 %v549
  %573 = vmatprep.subr.mxu0 0.0
  %574 = vmatpush1.msra.mxu0 %v548
  %575 = vmatprep.subr.mxu0 0.0
  %576 = vmatpush1.msra.mxu0 %v547
  %577 = vmatprep.subr.mxu0 0.0
  %578 = vmatpush1.msra.mxu0 %v546
  %579 = vmatprep.subr.mxu0 0.0
  %580 = vmatpush1.msra.mxu0 %v545
  %581 = vmatprep.subr.mxu0 0.0
  %582 = vmatpush1.msra.mxu0 %v544
  %583 = vmatprep.subr.mxu0 0.0
  %584 = vmatpush1.msra.mxu0 %v543
  %585 = vmatprep.subr.mxu0 0.0
  %586 = vmatpush1.msra.mxu0 %v542
  %587 = vmatprep.subr.mxu0 0.0
  %588 = vmatpush1.msra.mxu0 %v541
  %589 = vmatprep.subr.mxu0 0.0
  %590 = vmatpush2.msra.mxu0 0.0
  %591 = vmatprep.subr.mxu0 0.0
  %592 = vmatpush2.msra.mxu0 0.0
  %593 = vmatprep.subr.mxu0 0.0
  %594 = vmatpush2.msra.mxu0 0.0
  %595 = vmatprep.subr.mxu0 0.0
  %596 = vmatpush2.msra.mxu0 0.0
  %597 = vmatprep.subr.mxu0 0.0
  %598 = vmatpush2.msra.mxu0 0.0
  %599 = vmatprep.subr.mxu0 0.0
  %600 = vmatpush2.msra.mxu0 0.0
  %601 = vmatprep.subr.mxu0 0.0
  %602 = vmatpush2.msra.mxu0 0.0
  %603 = vmatprep.subr.mxu0 0.0
  %604 = vmatpush2.msra.mxu0 0.0
  %605 = vmatprep.subr.mxu0 0.0
  %606 = vmatpush2.msra.mxu0 0.0
  %607 = vmatprep.subr.mxu0 0.0
  %608 = vmatpush2.msra.mxu0 0.0
  %609 = vmatprep.subr.mxu0 0.0
  %610 = vmatpush2.msra.mxu0 0.0
  %611 = vmatprep.subr.mxu0 0.0
  %612 = vmatpush2.msra.mxu0 0.0
  %613 = vmatprep.subr.mxu0 0.0
  %614 = vmatpush2.msra.mxu0 0.0
  %615 = vmatprep.subr.mxu0 0.0
  %616 = vmatpush2.msra.mxu0 0.0
  %617 = vmatprep.subr.mxu0 0.0
  %618 = vmatpush2.msra.mxu0 0.0
  %619 = vmatprep.subr.mxu0 0.0
  %620 = vmatpush2.msra.mxu0 0.0
  %621 = vmatprep.mubr.f32.mxu0 0.0
  %622 = vmatmul.mubr.f32.gmra.mxu0 %v536
  %v623 = vpop.f32.mrf.mxu0
  %v624 = vadd.f32 0.0, %v623
  %v625 = vpop.f32.mrf.mxu0
  %626 = vdwg.mxu0
  %v627 = vadd.f32 %v540, %v624
  %v628 = vtanh.pop %v627
  %s629 = scalar_lea.vmem %s5, 32
  %630 = vst [vmem:[%s629] sm:$0xff] %v628
  %s631 = scalar_lea.vmem [#allocation2], 40
  %v632 = vld [vmem:[%s631] sm:$0xff]
  %v633 = vld [vmem:[%s3] sm:$0xff]
  %v634 = vld [vmem:[%s3 + $0x8] sm:$0xff]
  %v635 = vld [vmem:[%s3 + $0x10] sm:$0xff]
  %v636 = vld [vmem:[%s3 + $0x18] sm:$0xff]
  %v637 = vld [vmem:[%s3 + $0x20] sm:$0xff]
  %v638 = vld [vmem:[%s3 + $0x28] sm:$0xff]
  %v639 = vld [vmem:[%s3 + $0x30] sm:$0xff]
  %v640 = vld [vmem:[%s3 + $0x38] sm:$0xff]
  %v641 = vld [vmem:[%s3 + $0x40] sm:$0xff]
  %v642 = vld [vmem:[%s3 + $0x48] sm:$0xff]
  %v643 = vld [vmem:[%s3 + $0x50] sm:$0xff]
  %v644 = vld [vmem:[%s3 + $0x58] sm:$0xff]
  %v645 = vld [vmem:[%s3 + $0x60] sm:$0xff]
  %v646 = vld [vmem:[%s3 + $0x68] sm:$0xff]
  %v647 = vld [vmem:[%s3 + $0x70] sm:$0xff]
  %v648 = vld [vmem:[%s3 + $0x78] sm:$0xff]
  %649 = vmatprep.subr.mxu0 0.0
  %650 = vmatpush1.msra.mxu0 %v648
  %651 = vmatprep.subr.mxu0 0.0
  %652 = vmatpush1.msra.mxu0 %v647
  %653 = vmatprep.subr.mxu0 0.0
  %654 = vmatpush1.msra.mxu0 %v646
  %655 = vmatprep.subr.mxu0 0.0
  %656 = vmatpush1.msra.mxu0 %v645
  %657 = vmatprep.subr.mxu0 0.0
  %658 = vmatpush1.msra.mxu0 %v644
  %659 = vmatprep.subr.mxu0 0.0
  %660 = vmatpush1.msra.mxu0 %v643
  %661 = vmatprep.subr.mxu0 0.0
  %662 = vmatpush1.msra.mxu0 %v642
  %663 = vmatprep.subr.mxu0 0.0
  %664 = vmatpush1.msra.mxu0 %v641
  %665 = vmatprep.subr.mxu0 0.0
  %666 = vmatpush1.msra.mxu0 %v640
  %667 = vmatprep.subr.mxu0 0.0
  %668 = vmatpush1.msra.mxu0 %v639
  %669 = vmatprep.subr.mxu0 0.0
  %670 = vmatpush1.msra.mxu0 %v638
  %671 = vmatprep.subr.mxu0 0.0
  %672 = vmatpush1.msra.mxu0 %v637
  %673 = vmatprep.subr.mxu0 0.0
  %674 = vmatpush1.msra.mxu0 %v636
  %675 = vmatprep.subr.mxu0 0.0
  %676 = vmatpush1.msra.mxu0 %v635
  %677 = vmatprep.subr.mxu0 0.0
  %678 = vmatpush1.msra.mxu0 %v634
  %679 = vmatprep.subr.mxu0 0.0
  %680 = vmatpush1.msra.mxu0 %v633
  %681 = vmatprep.subr.mxu0 0.0
  %682 = vmatpush2.msra.mxu0 0.0
  %683 = vmatprep.subr.mxu0 0.0
  %684 = vmatpush2.msra.mxu0 0.0
  %685 = vmatprep.subr.mxu0 0.0
  %686 = vmatpush2.msra.mxu0 0.0
  %687 = vmatprep.subr.mxu0 0.0
  %688 = vmatpush2.msra.mxu0 0.0
  %689 = vmatprep.subr.mxu0 0.0
  %690 = vmatpush2.msra.mxu0 0.0
  %691 = vmatprep.subr.mxu0 0.0
  %692 = vmatpush2.msra.mxu0 0.0
  %693 = vmatprep.subr.mxu0 0.0
  %694 = vmatpush2.msra.mxu0 0.0
  %695 = vmatprep.subr.mxu0 0.0
  %696 = vmatpush2.msra.mxu0 0.0
  %697 = vmatprep.subr.mxu0 0.0
  %698 = vmatpush2.msra.mxu0 0.0
  %699 = vmatprep.subr.mxu0 0.0
  %700 = vmatpush2.msra.mxu0 0.0
  %701 = vmatprep.subr.mxu0 0.0
  %702 = vmatpush2.msra.mxu0 0.0
  %703 = vmatprep.subr.mxu0 0.0
  %704 = vmatpush2.msra.mxu0 0.0
  %705 = vmatprep.subr.mxu0 0.0
  %706 = vmatpush2.msra.mxu0 0.0
  %707 = vmatprep.subr.mxu0 0.0
  %708 = vmatpush2.msra.mxu0 0.0
  %709 = vmatprep.subr.mxu0 0.0
  %710 = vmatpush2.msra.mxu0 0.0
  %711 = vmatprep.subr.mxu0 0.0
  %712 = vmatpush2.msra.mxu0 0.0
  %713 = vmatprep.mubr.f32.mxu0 0.0
  %714 = vmatmul.mubr.f32.gmra.mxu0 %v628
  %v715 = vpop.f32.mrf.mxu0
  %v716 = vadd.f32 0.0, %v715
  %v717 = vpop.f32.mrf.mxu0
  %718 = vdwg.mxu0
  %v719 = vadd.f32 %v632, %v716
  %v720 = vtanh.pop %v719
  %s721 = scalar_lea.vmem %s5, 40
  %722 = vst [vmem:[%s721] sm:$0xff] %v720
  %s723 = scalar_lea.vmem [#allocation2], 48
  %v724 = vld [vmem:[%s723] sm:$0xff]
  %v725 = vld [vmem:[%s3] sm:$0xff]
  %v726 = vld [vmem:[%s3 + $0x8] sm:$0xff]
  %v727 = vld [vmem:[%s3 + $0x10] sm:$0xff]
  %v728 = vld [vmem:[%s3 + $0x18] sm:$0xff]
  %v729 = vld [vmem:[%s3 + $0x20] sm:$0xff]
  %v730 = vld [vmem:[%s3 + $0x28] sm:$0xff]
  %v731 = vld [vmem:[%s3 + $0x30] sm:$0xff]
  %v732 = vld [vmem:[%s3 + $0x38] sm:$0xff]
  %v733 = vld [vmem:[%s3 + $0x40] sm:$0xff]
  %v734 = vld [vmem:[%s3 + $0x48] sm:$0xff]
  %v735 = vld [vmem:[%s3 + $0x50] sm:$0xff]
  %v736 = vld [vmem:[%s3 + $0x58] sm:$0xff]
  %v737 = vld [vmem:[%s3 + $0x60] sm:$0xff]
  %v738 = vld [vmem:[%s3 + $0x68] sm:$0xff]
  %v739 = vld [vmem:[%s3 + $0x70] sm:$0xff]
  %v740 = vld [vmem:[%s3 + $0x78] sm:$0xff]
  %741 = vmatprep.subr.mxu0 0.0
  %742 = vmatpush1.msra.mxu0 %v740
  %743 = vmatprep.subr.mxu0 0.0
  %744 = vmatpush1.msra.mxu0 %v739
  %745 = vmatprep.subr.mxu0 0.0
  %746 = vmatpush1.msra.mxu0 %v738
  %747 = vmatprep.subr.mxu0 0.0
  %748 = vmatpush1.msra.mxu0 %v737
  %749 = vmatprep.subr.mxu0 0.0
  %750 = vmatpush1.msra.mxu0 %v736
  %751 = vmatprep.subr.mxu0 0.0
  %752 = vmatpush1.msra.mxu0 %v735
  %753 = vmatprep.subr.mxu0 0.0
  %754 = vmatpush1.msra.mxu0 %v734
  %755 = vmatprep.subr.mxu0 0.0
  %756 = vmatpush1.msra.mxu0 %v733
  %757 = vmatprep.subr.mxu0 0.0
  %758 = vmatpush1.msra.mxu0 %v732
  %759 = vmatprep.subr.mxu0 0.0
  %760 = vmatpush1.msra.mxu0 %v731
  %761 = vmatprep.subr.mxu0 0.0
  %762 = vmatpush1.msra.mxu0 %v730
  %763 = vmatprep.subr.mxu0 0.0
  %764 = vmatpush1.msra.mxu0 %v729
  %765 = vmatprep.subr.mxu0 0.0
  %766 = vmatpush1.msra.mxu0 %v728
  %767 = vmatprep.subr.mxu0 0.0
  %768 = vmatpush1.msra.mxu0 %v727
  %769 = vmatprep.subr.mxu0 0.0
  %770 = vmatpush1.msra.mxu0 %v726
  %771 = vmatprep.subr.mxu0 0.0
  %772 = vmatpush1.msra.mxu0 %v725
  %773 = vmatprep.subr.mxu0 0.0
  %774 = vmatpush2.msra.mxu0 0.0
  %775 = vmatprep.subr.mxu0 0.0
  %776 = vmatpush2.msra.mxu0 0.0
  %777 = vmatprep.subr.mxu0 0.0
  %778 = vmatpush2.msra.mxu0 0.0
  %779 = vmatprep.subr.mxu0 0.0
  %780 = vmatpush2.msra.mxu0 0.0
  %781 = vmatprep.subr.mxu0 0.0
  %782 = vmatpush2.msra.mxu0 0.0
  %783 = vmatprep.subr.mxu0 0.0
  %784 = vmatpush2.msra.mxu0 0.0
  %785 = vmatprep.subr.mxu0 0.0
  %786 = vmatpush2.msra.mxu0 0.0
  %787 = vmatprep.subr.mxu0 0.0
  %788 = vmatpush2.msra.mxu0 0.0
  %789 = vmatprep.subr.mxu0 0.0
  %790 = vmatpush2.msra.mxu0 0.0
  %791 = vmatprep.subr.mxu0 0.0
  %792 = vmatpush2.msra.mxu0 0.0
  %793 = vmatprep.subr.mxu0 0.0
  %794 = vmatpush2.msra.mxu0 0.0
  %795 = vmatprep.subr.mxu0 0.0
  %796 = vmatpush2.msra.mxu0 0.0
  %797 = vmatprep.subr.mxu0 0.0
  %798 = vmatpush2.msra.mxu0 0.0
  %799 = vmatprep.subr.mxu0 0.0
  %800 = vmatpush2.msra.mxu0 0.0
  %801 = vmatprep.subr.mxu0 0.0
  %802 = vmatpush2.msra.mxu0 0.0
  %803 = vmatprep.subr.mxu0 0.0
  %804 = vmatpush2.msra.mxu0 0.0
  %805 = vmatprep.mubr.f32.mxu0 0.0
  %806 = vmatmul.mubr.f32.gmra.mxu0 %v720
  %v807 = vpop.f32.mrf.mxu0
  %v808 = vadd.f32 0.0, %v807
  %v809 = vpop.f32.mrf.mxu0
  %810 = vdwg.mxu0
  %v811 = vadd.f32 %v724, %v808
  %v812 = vtanh.pop %v811
  %s813 = scalar_lea.vmem %s5, 48
  %814 = vst [vmem:[%s813] sm:$0xff] %v812
  %s815 = scalar_lea.vmem [#allocation2], 56
  %v816 = vld [vmem:[%s815] sm:$0xff]
  %v817 = vld [vmem:[%s3] sm:$0xff]
  %v818 = vld [vmem:[%s3 + $0x8] sm:$0xff]
  %v819 = vld [vmem:[%s3 + $0x10] sm:$0xff]
  %v820 = vld [vmem:[%s3 + $0x18] sm:$0xff]
  %v821 = vld [vmem:[%s3 + $0x20] sm:$0xff]
  %v822 = vld [vmem:[%s3 + $0x28] sm:$0xff]
  %v823 = vld [vmem:[%s3 + $0x30] sm:$0xff]
  %v824 = vld [vmem:[%s3 + $0x38] sm:$0xff]
  %v825 = vld [vmem:[%s3 + $0x40] sm:$0xff]
  %v826 = vld [vmem:[%s3 + $0x48] sm:$0xff]
  %v827 = vld [vmem:[%s3 + $0x50] sm:$0xff]
  %v828 = vld [vmem:[%s3 + $0x58] sm:$0xff]
  %v829 = vld [vmem:[%s3 + $0x60] sm:$0xff]
  %v830 = vld [vmem:[%s3 + $0x68] sm:$0xff]
  %v831 = vld [vmem:[%s3 + $0x70] sm:$0xff]
  %v832 = vld [vmem:[%s3 + $0x78] sm:$0xff]
  %833 = vmatprep.subr.mxu0 0.0
  %834 = vmatpush1.msra.mxu0 %v832
  %835 = vmatprep.subr.mxu0 0.0
  %836 = vmatpush1.msra.mxu0 %v831
  %837 = vmatprep.subr.mxu0 0.0
  %838 = vmatpush1.msra.mxu0 %v830
  %839 = vmatprep.subr.mxu0 0.0
  %840 = vmatpush1.msra.mxu0 %v829
  %841 = vmatprep.subr.mxu0 0.0
  %842 = vmatpush1.msra.mxu0 %v828
  %843 = vmatprep.subr.mxu0 0.0
  %844 = vmatpush1.msra.mxu0 %v827
  %845 = vmatprep.subr.mxu0 0.0
  %846 = vmatpush1.msra.mxu0 %v826
  %847 = vmatprep.subr.mxu0 0.0
  %848 = vmatpush1.msra.mxu0 %v825
  %849 = vmatprep.subr.mxu0 0.0
  %850 = vmatpush1.msra.mxu0 %v824
  %851 = vmatprep.subr.mxu0 0.0
  %852 = vmatpush1.msra.mxu0 %v823
  %853 = vmatprep.subr.mxu0 0.0
  %854 = vmatpush1.msra.mxu0 %v822
  %855 = vmatprep.subr.mxu0 0.0
  %856 = vmatpush1.msra.mxu0 %v821
  %857 = vmatprep.subr.mxu0 0.0
  %858 = vmatpush1.msra.mxu0 %v820
  %859 = vmatprep.subr.mxu0 0.0
  %860 = vmatpush1.msra.mxu0 %v819
  %861 = vmatprep.subr.mxu0 0.0
  %862 = vmatpush1.msra.mxu0 %v818
  %863 = vmatprep.subr.mxu0 0.0
  %864 = vmatpush1.msra.mxu0 %v817
  %865 = vmatprep.subr.mxu0 0.0
  %866 = vmatpush2.msra.mxu0 0.0
  %867 = vmatprep.subr.mxu0 0.0
  %868 = vmatpush2.msra.mxu0 0.0
  %869 = vmatprep.subr.mxu0 0.0
  %870 = vmatpush2.msra.mxu0 0.0
  %871 = vmatprep.subr.mxu0 0.0
  %872 = vmatpush2.msra.mxu0 0.0
  %873 = vmatprep.subr.mxu0 0.0
  %874 = vmatpush2.msra.mxu0 0.0
  %875 = vmatprep.subr.mxu0 0.0
  %876 = vmatpush2.msra.mxu0 0.0
  %877 = vmatprep.subr.mxu0 0.0
  %878 = vmatpush2.msra.mxu0 0.0
  %879 = vmatprep.subr.mxu0 0.0
  %880 = vmatpush2.msra.mxu0 0.0
  %881 = vmatprep.subr.mxu0 0.0
  %882 = vmatpush2.msra.mxu0 0.0
  %883 = vmatprep.subr.mxu0 0.0
  %884 = vmatpush2.msra.mxu0 0.0
  %885 = vmatprep.subr.mxu0 0.0
  %886 = vmatpush2.msra.mxu0 0.0
  %887 = vmatprep.subr.mxu0 0.0
  %888 = vmatpush2.msra.mxu0 0.0
  %889 = vmatprep.subr.mxu0 0.0
  %890 = vmatpush2.msra.mxu0 0.0
  %891 = vmatprep.subr.mxu0 0.0
  %892 = vmatpush2.msra.mxu0 0.0
  %893 = vmatprep.subr.mxu0 0.0
  %894 = vmatpush2.msra.mxu0 0.0
  %895 = vmatprep.subr.mxu0 0.0
  %896 = vmatpush2.msra.mxu0 0.0
  %897 = vmatprep.mubr.f32.mxu0 0.0
  %898 = vmatmul.mubr.f32.gmra.mxu0 %v812
  %v899 = vpop.f32.mrf.mxu0
  %v900 = vadd.f32 0.0, %v899
  %v901 = vpop.f32.mrf.mxu0
  %902 = vdwg.mxu0
  %v903 = vadd.f32 %v816, %v900
  %v904 = vtanh.pop %v903
  %s905 = scalar_lea.vmem %s5, 56
  %906 = vst [vmem:[%s905] sm:$0xff] %v904
  %907 = vst [vmem:[#allocation3] sm:$0xff] %v904
  // Predicated region
  $region26: #{srn_forward.3} parent=0 // pred_check
    %p908 = pneg %p166
  $region27: #{srn_forward.3} parent=0 // pred_check_branch
    %910 = sbr.rel (%p908) target = $region29
  $region28: #{srn_forward.3} parent=0 // pred_region
    %911 = vst [vmem:[%s6] sm:$0xff] %v904
  $region29: #{srn_forward.3} parent=0 // pred_fallthru
    _
  // Predicated region
  $region30: #{srn_forward.3} parent=0 // pred_check
    _
  $region31: #{srn_forward.3} parent=0 // pred_check_branch
    %913 = sbr.rel (0) target = $region33
  $region32: #{srn_forward.3} parent=0 // pred_region
    _
  $region33: #{srn_forward.3} parent=0 // pred_fallthru
    _
  // Predicated region
  $region34: #{srn_forward.3} parent=0 // pred_check
    _
  $region35: #{srn_forward.3} parent=0 // pred_check_branch
    %915 = sbr.rel (0) target = $region37
  $region36: #{srn_forward.3} parent=0 // pred_region
    _
  $region37: #{srn_forward.3} parent=0 // pred_fallthru
    _
  // Predicated region
  $region38: #{srn_forward.3} parent=0 // pred_check
    _
  $region39: #{srn_forward.3} parent=0 // pred_check_branch
    %917 = sbr.rel (0) target = $region41
  $region40: #{srn_forward.3} parent=0 // pred_region
    _
  $region41: #{srn_forward.3} parent=0 // pred_fallthru
    _
  // Predicated region
  $region42: #{srn_forward.3} parent=0 // pred_check
    _
  $region43: #{srn_forward.3} parent=0 // pred_check_branch
    %919 = sbr.rel (0) target = $region45
  $region44: #{srn_forward.3} parent=0 // pred_region
    _
  $region45: #{srn_forward.3} parent=0 // pred_fallthru
    _

</llo_original>
